<compile_context>
chip_gen: v7x
topology: tpu7x:2x2x1
jax: 0.10.0
libtpu: 0.0.40
codegen_flags: <defaults>
</compile_context>

<pallas_src>
import functools

import jax
import jax.numpy as jnp
from jax import lax
from jax.experimental import pallas as pl
from jax.experimental.pallas import tpu as pltpu


# ---------------------------------------------------------------------------
# small in-kernel helpers
# ---------------------------------------------------------------------------
def _prelu(x, alpha):
    return jnp.where(x >= 0, x, x * alpha)


def _shift_lanes(x, shift):
    """out[:, p] = x[:, p + shift] (zero outside range); `shift` is a static int."""
    if shift == 0:
        return x
    c = x.shape[0]
    pad = jnp.zeros((c, abs(shift)), x.dtype)
    if shift > 0:
        return jnp.concatenate([x[:, shift:], pad], axis=1)
    return jnp.concatenate([pad, x[:, :shift]], axis=1)


# ---------------------------------------------------------------------------
# fully fused forward kernel (one grid step = one batch element)
# ---------------------------------------------------------------------------
def _fused_forward_kernel(V, cout, row_off,
                          x_ref, ablk_ref, sw_ref, sb_ref, wt_ref,
                          m1_ref, m2_ref, bc_ref, smat_ref, alpha_ref, o_ref):
    f32 = jnp.float32
    x = x_ref[...]                                                 # (cin, T*V)

    # ---- st_gcn: gcn 1x1 conv + residual 1x1 conv fused on the shared RHS x
    hr = jnp.dot(sw_ref[...], x, preferred_element_type=f32)      # (2*row_off, T*V)
    h = hr[0:cout, :] + sb_ref[:, 0:1]                             # folded gcn 1x1
    res = hr[row_off:row_off + cout, :] + sb_ref[:, 3:4]           # folded residual 1x1
    # graph conv against the precomputed block-diagonal adjacency (hoisted weight)
    g = jnp.dot(h, ablk_ref[...], preferred_element_type=f32) + sb_ref[:, 1:2]
    z = _prelu(g, alpha_ref[0])
    # temporal conv (kernel 3 along T, pad 1) as a single matmul over a stacked slab
    zcat = jnp.concatenate([_shift_lanes(z, -V), z, _shift_lanes(z, V)], axis=0)
    tcn = jnp.dot(wt_ref[...], zcat, preferred_element_type=f32) + sb_ref[:, 2:3]
    y = _prelu(tcn + res, alpha_ref[1])                            # (cout, T*V)

    # ---- both 3x3 convs WITHOUT the layout permutes:
    # rows = cout (the conv's H axis), lanes = chan*V.  kw shifts + boundary masks
    # are folded into m1/m2; the kh (row) shift is a tiny shift-matrix matmul.
    s_up = smat_ref[0]          # (cout,cout): (s_up @ a)[c] = a[c-1]
    s_dn = smat_ref[1]          # (cout,cout): (s_dn @ a)[c] = a[c+1]

    def conv3x3(inp, m_ref, bias_row):
        km1 = jnp.dot(s_up, inp, preferred_element_type=f32)
        kp1 = jnp.dot(s_dn, inp, preferred_element_type=f32)
        return (jnp.dot(km1, m_ref[0], preferred_element_type=f32)
                + jnp.dot(inp, m_ref[1], preferred_element_type=f32)
                + jnp.dot(kp1, m_ref[2], preferred_element_type=f32)
                + bias_row)

    c1 = _prelu(conv3x3(y, m1_ref, bc_ref[0:1, :]), alpha_ref[2])  # (cout, pred_t*V)
    c2 = conv3x3(c1, m2_ref, bc_ref[1:2, :])                       # (cout, pred_t*V)

    # c2 IS the final permuted output slab: o[c, p*V + w] = conv_out[p, c, w]
    o_ref[...] = c2.astype(o_ref.dtype)


# ---------------------------------------------------------------------------
# parameter folding / packing for the kernel
# ---------------------------------------------------------------------------
def _prepare_kernel_params(params, T, V):
    p = params["stgcn"]
    s1, t1, s2, t2, sr, tr = p["s1"], p["t1"], p["s2"], p["t2"], p["sr"], p["tr"]
    co, ci = p["w1"].shape
    # BN1 scale commutes through the @A matmul -> fold into the gcn 1x1 conv
    w1f = s1 * p["w1"]
    b1f = s1 * p["b1"]
    # BN2 folds fully into the temporal conv
    wtf = s2[:, :, None] * p["wt"]                                 # (co, ci, 3)
    wtcat = jnp.transpose(wtf, (0, 2, 1)).reshape(co, -1)          # (co, 3*co), (dt,i) cols
    btf = s2 * p["bt"] + t2
    # BNres folds fully into the residual 1x1 conv
    wrf = sr * p["wr"]
    brf = sr * p["br"] + tr

    # stack gcn + residual 1x1 weights on 8-aligned row offsets (one fused matmul)
    row_off = ((co + 7) // 8) * 8
    sw = jnp.zeros((2 * row_off, ci), jnp.float32)
    sw = sw.at[0:co].set(w1f).at[row_off:row_off + co].set(wrf)
    sb = jnp.concatenate([b1f, t1, btf, brf], axis=1)              # (co, 4)

    # 3x3 convs: fold the kw (width) shift + boundary mask into right-hand matrices:
    #   M[kh][t*V + w'', p*V + w] = sum_kw W[p, t, kh, kw] * [w'' == w + kw - 1]
    def conv_to_m(w):
        o_ch, i_ch = w.shape[0], w.shape[1]
        kw = jnp.arange(3)
        wpp = jnp.arange(V)
        delta = (wpp[None, :, None] ==
                 (jnp.arange(V)[None, None, :] + kw[:, None, None] - 1)).astype(jnp.float32)
        m = jnp.einsum("pthk,kuw->htupw", w, delta)                # (3, i_ch, V, o_ch, V)
        return m.reshape(3, i_ch * V, o_ch * V)

    t0, to = params["tpcnn0"], params["tpcnn_out"]
    m1 = conv_to_m(t0["w"])                                        # (3, T*V, pred_t*V)
    m2 = conv_to_m(to["w"])                                        # (3, pred_t*V, pred_t*V)
    pred_t = t0["w"].shape[0]
    b1lane = jnp.repeat(t0["b"].reshape(-1), V)                    # bias varies with lane (p)
    b2lane = jnp.repeat(to["b"].reshape(-1), V)
    bc = jnp.stack([b1lane, b2lane], axis=0)                       # (2, pred_t*V)

    # (cout,cout) sublane-shift matrices for the conv's kh axis (run on the idle MXU)
    r = jnp.arange(co)
    s_up = (r[:, None] == r[None, :] + 1).astype(jnp.float32)      # (s_up @ a)[c] = a[c-1]
    s_dn = (r[:, None] + 1 == r[None, :]).astype(jnp.float32)      # (s_dn @ a)[c] = a[c+1]
    smat = jnp.stack([s_up, s_dn], axis=0)                         # (2, co, co)

    alphas = jnp.stack([p["a1"][0, 0], p["ao"][0, 0], t0["alpha"][0, 0]])   # (3,)
    return dict(sw=sw, sb=sb, wt=wtcat, m1=m1, m2=m2, bc=bc, smat=smat,
                alphas=alphas, row_off=row_off, cout=co, pred_t=pred_t)


# ---------------------------------------------------------------------------
# full forward pass
# ---------------------------------------------------------------------------
def social_stgcnn_forward(v, a, hot_enc, params):
    del hot_enc  # only used when config.class_enc is True (not implemented)
    N, cin, T, V = v.shape
    kp = _prepare_kernel_params(params, T, V)
    cout, pred_t, row_off = kp["cout"], kp["pred_t"], kp["row_off"]
    tv = T * V

    x_flat = v.reshape(N, cin, tv)
    # block-diagonal adjacency precomputed ONCE in the wrapper (batch-invariant,
    # hoisted out of the grid loop): ablk[t*V+u, s*V+w] = eye[t,s] * a[t,u,w]
    ablk = jnp.einsum("ts,tvw->tvsw", jnp.eye(T, dtype=jnp.float32), a).reshape(tv, tv)

    kernel = functools.partial(_fused_forward_kernel, V, cout, row_off)
    full = lambda arr: pl.BlockSpec(arr.shape, lambda n, _nd=arr.ndim: (0,) * _nd)
    weight_args = (ablk, kp["sw"], kp["sb"], kp["wt"], kp["m1"], kp["m2"],
                   kp["bc"], kp["smat"])
    in_specs = ([pl.BlockSpec((pl.Squeezed(), cin, tv), lambda n: (n, 0, 0))]
                + [full(w) for w in weight_args]
                + [pl.BlockSpec(memory_space=pltpu.MemorySpace.SMEM)])

    out_flat = pl.pallas_call(
        kernel,
        out_shape=jax.ShapeDtypeStruct((N, cout, pred_t * V), jnp.float32),
        grid=(N,),
        in_specs=in_specs,
        out_specs=pl.BlockSpec((pl.Squeezed(), cout, pred_t * V), lambda n: (n, 0, 0)),
        compiler_params=pltpu.CompilerParams(dimension_semantics=("parallel",)),
    )(x_flat, *weight_args, kp["alphas"])

    out = out_flat.reshape(N, cout, pred_t, V)
    return out, a


# ---------------------------------------------------------------------------
# deterministic parameter initialization (shapes per the module __init__)
# ---------------------------------------------------------------------------
def init_params(key, input_feat=2, output_feat=5, seq_len=8, pred_seq_len=12):
    ks = iter(jax.random.split(key, 32))

    def u(shape, scale):
        return jax.random.uniform(next(ks), shape, jnp.float32, -scale, scale)

    def bn(c):  # inference-mode BatchNorm folded to per-channel scale/shift
        gamma = 1.0 + u((c,), 0.2)
        beta = u((c,), 0.1)
        mean = u((c,), 0.1)
        var = 1.0 + jnp.abs(u((c,), 0.2))
        scale = gamma / jnp.sqrt(var + 1e-5)
        shift = beta - mean * scale
        return scale.reshape(c, 1), shift.reshape(c, 1)

    ci, co = input_feat, output_feat
    w1 = u((co, ci), 1.0 / (ci ** 0.5))
    b1 = u((co, 1), 1.0 / (ci ** 0.5))
    s1, t1 = bn(co)
    wt = u((co, co, 3), 1.0 / ((co * 3) ** 0.5))
    bt = u((co, 1), 1.0 / ((co * 3) ** 0.5))
    s2, t2 = bn(co)
    wr = u((co, ci), 1.0 / (ci ** 0.5))
    br = u((co, 1), 1.0 / (ci ** 0.5))
    sr, tr = bn(co)
    stgcn = dict(w1=w1, b1=b1, s1=s1, t1=t1,
                 a1=jnp.full((1, 1), 0.25, jnp.float32),
                 wt=wt, bt=bt, s2=s2, t2=t2,
                 wr=wr, br=br, sr=sr, tr=tr,
                 ao=jnp.full((1, 1), 0.2, jnp.float32))

    def conv3x3_params(cin_, cout_, alpha_val):
        w = u((cout_, cin_, 3, 3), 1.0 / ((cin_ * 9) ** 0.5))
        b = u((cout_, 1), 1.0 / ((cin_ * 9) ** 0.5))
        return dict(w=w, b=b, alpha=jnp.full((1, 1), alpha_val, jnp.float32))

    tpcnn0 = conv3x3_params(seq_len, pred_seq_len, 0.15)
    tpcnn_out = conv3x3_params(pred_seq_len, pred_seq_len, 1.0)  # alpha unused
    return dict(stgcn=stgcn, tpcnn0=tpcnn0, tpcnn_out=tpcnn_out)


# ---------------------------------------------------------------------------
# pure-JAX reference (mirrors the PyTorch forward, f32 / HIGHEST precision)
# ---------------------------------------------------------------------------
def reference_forward(v, a, params):
    HI = lax.Precision.HIGHEST
    p = params["stgcn"]
    cvec = lambda x: x.reshape(1, -1, 1, 1)
    h = jnp.einsum("oi,nitv->notv", p["w1"], v, precision=HI) + cvec(p["b1"])
    g = jnp.einsum("nctv,tvw->nctw", h, a, precision=HI)
    z = g * cvec(p["s1"]) + cvec(p["t1"])
    z = _prelu(z, p["a1"][0, 0])
    T = v.shape[2]
    zp = jnp.pad(z, ((0, 0), (0, 0), (1, 1), (0, 0)))
    tcn = (jnp.einsum("oi,nitv->notv", p["wt"][:, :, 0], zp[:, :, 0:T, :], precision=HI)
           + jnp.einsum("oi,nitv->notv", p["wt"][:, :, 1], zp[:, :, 1:T + 1, :], precision=HI)
           + jnp.einsum("oi,nitv->notv", p["wt"][:, :, 2], zp[:, :, 2:T + 2, :], precision=HI)
           + cvec(p["bt"]))
    tcn = tcn * cvec(p["s2"]) + cvec(p["t2"])
    r = jnp.einsum("oi,nitv->notv", p["wr"], v, precision=HI) + cvec(p["br"])
    r = r * cvec(p["sr"]) + cvec(p["tr"])
    y = _prelu(tcn + r, p["ao"][0, 0])
    u = jnp.transpose(y, (0, 2, 1, 3))

    def conv3(x, w, b):
        return lax.conv_general_dilated(
            x, w, window_strides=(1, 1), padding=((1, 1), (1, 1)),
            dimension_numbers=("NCHW", "OIHW", "NCHW"),
            precision=HI) + b.reshape(1, -1, 1, 1)

    t0 = params["tpcnn0"]
    c1 = _prelu(conv3(u, t0["w"], t0["b"]), t0["alpha"][0, 0])
    to = params["tpcnn_out"]
    c2 = conv3(c1, to["w"], to["b"])
    return jnp.transpose(c2, (0, 2, 1, 3)), a


if __name__ == "__main__":
    key = jax.random.PRNGKey(0)
    kv, ka, kh, kp = jax.random.split(key, 4)
    N, C_in, T, V = 2, 2, 8, 16          # batch, input_feat, seq_len, graph nodes
    v = jax.random.uniform(kv, (N, C_in, T, V), jnp.float32, -1.0, 1.0)
    a = jax.random.uniform(ka, (T, V, V), jnp.float32, -0.5, 0.5)
    hot_enc = jax.random.uniform(kh, (V, 2), jnp.float32)  # unused (class_enc=False)
    params = init_params(kp)

    out, a_out = jax.jit(social_stgcnn_forward)(v, a, hot_enc, params)
    out = jax.block_until_ready(out)

    ref, _ = reference_forward(v, a, params)
    rel_err = float(jnp.max(jnp.abs(out - ref)) / (jnp.max(jnp.abs(ref)) + 1e-6))
    assert out.shape == (N, 5, 12, V), out.shape
    assert a_out.shape == a.shape
    # kernel dots run at default (single-pass bf16) MXU precision with f32 accumulation,
    # compared against an f32/HIGHEST reference -> allow up to 2e-2 normalized error.
    assert rel_err < 2e-2, rel_err
    print("KERNEL_OK")
</pallas_src>

<mosaic_0001>
module attributes {stable_mosaic.version = 11 : i64} {
  func.func @_fused_forward_kernel(%arg0: i32, %arg1: memref<1x2x128xf32, #tpu.memory_space<vmem>>, %arg2: memref<128x128xf32, #tpu.memory_space<vmem>>, %arg3: memref<16x2xf32, #tpu.memory_space<vmem>>, %arg4: memref<5x4xf32, #tpu.memory_space<vmem>>, %arg5: memref<5x15xf32, #tpu.memory_space<vmem>>, %arg6: memref<3x128x192xf32, #tpu.memory_space<vmem>>, %arg7: memref<3x192x192xf32, #tpu.memory_space<vmem>>, %arg8: memref<2x192xf32, #tpu.memory_space<vmem>>, %arg9: memref<2x5x5xf32, #tpu.memory_space<vmem>>, %arg10: memref<3xf32, #tpu.memory_space<smem>>, %arg11: memref<1x5x192xf32, #tpu.memory_space<vmem>>) attributes {dimension_semantics = [#tpu.dimension_semantics<parallel>], iteration_bounds = array<i64: 2>, scalar_prefetch = 0 : i64, scratch_operands = 0 : i64, tpu.core_type = #tpu.core_type<tc>, window_params = [{transform_indices = @transform_0, window_bounds = array<i64: 1, 2, 128>}, {pipeline_mode = #tpu.pipeline_mode<synchronous>, transform_indices = @transform_1, window_bounds = array<i64: 128, 128>}, {pipeline_mode = #tpu.pipeline_mode<synchronous>, transform_indices = @transform_2, window_bounds = array<i64: 16, 2>}, {pipeline_mode = #tpu.pipeline_mode<synchronous>, transform_indices = @transform_3, window_bounds = array<i64: 5, 4>}, {pipeline_mode = #tpu.pipeline_mode<synchronous>, transform_indices = @transform_4, window_bounds = array<i64: 5, 15>}, {pipeline_mode = #tpu.pipeline_mode<synchronous>, transform_indices = @transform_5, window_bounds = array<i64: 3, 128, 192>}, {pipeline_mode = #tpu.pipeline_mode<synchronous>, transform_indices = @transform_6, window_bounds = array<i64: 3, 192, 192>}, {pipeline_mode = #tpu.pipeline_mode<synchronous>, transform_indices = @transform_7, window_bounds = array<i64: 2, 192>}, {pipeline_mode = #tpu.pipeline_mode<synchronous>, transform_indices = @transform_8, window_bounds = array<i64: 2, 5, 5>}, {transform_indices = @transform_9, window_bounds = array<i64: 3>}, {transform_indices = @transform_10, window_bounds = array<i64: 1, 5, 192>}]} {
    %c0 = arith.constant 0 : index
    %c0_0 = arith.constant 0 : index
    %c0_1 = arith.constant 0 : index
    %0 = vector.load %arg1[%c0, %c0_0, %c0_1] : memref<1x2x128xf32, #tpu.memory_space<vmem>>, vector<1x2x128xf32>
    %1 = vector.shape_cast %0 : vector<1x2x128xf32> to vector<2x128xf32>
    %c0_2 = arith.constant 0 : index
    %c0_3 = arith.constant 0 : index
    %2 = vector.load %arg3[%c0_2, %c0_3] : memref<16x2xf32, #tpu.memory_space<vmem>>, vector<16x2xf32>
    %cst = arith.constant dense<0.000000e+00> : vector<16x128xf32>
    %3 = tpu.matmul %2, %1, %cst {dimension_numbers = #tpu.dot_dimension_numbers<[1], [0], [0], [1], [0, 0, 1, 1], [], []>} : vector<16x2xf32>, vector<2x128xf32>, vector<16x128xf32> -> vector<16x128xf32>
    %4 = vector.extract_strided_slice %3 {offsets = [0, 0], sizes = [5, 128], strides = [1, 1]} : vector<16x128xf32> to vector<5x128xf32>
    %c0_4 = arith.constant 0 : index
    %c0_5 = arith.constant 0 : index
    %5 = vector.load %arg4[%c0_4, %c0_5] : memref<5x4xf32, #tpu.memory_space<vmem>>, vector<5x1xf32>
    %6 = vector.broadcast %5 : vector<5x1xf32> to vector<5x128xf32>
    %7 = arith.addf %4, %6 : vector<5x128xf32>
    %8 = vector.extract_strided_slice %3 {offsets = [8, 0], sizes = [5, 128], strides = [1, 1]} : vector<16x128xf32> to vector<5x128xf32>
    %c0_6 = arith.constant 0 : index
    %c3 = arith.constant 3 : index
    %9 = vector.load %arg4[%c0_6, %c3] : memref<5x4xf32, #tpu.memory_space<vmem>>, vector<5x1xf32>
    %10 = vector.broadcast %9 : vector<5x1xf32> to vector<5x128xf32>
    %11 = arith.addf %8, %10 : vector<5x128xf32>
    %c0_7 = arith.constant 0 : index
    %c0_8 = arith.constant 0 : index
    %12 = vector.load %arg2[%c0_7, %c0_8] : memref<128x128xf32, #tpu.memory_space<vmem>>, vector<128x128xf32>
    %cst_9 = arith.constant dense<0.000000e+00> : vector<5x128xf32>
    %13 = tpu.matmul %7, %12, %cst_9 {dimension_numbers = #tpu.dot_dimension_numbers<[1], [0], [0], [1], [0, 0, 1, 1], [], []>} : vector<5x128xf32>, vector<128x128xf32>, vector<5x128xf32> -> vector<5x128xf32>
    %c0_10 = arith.constant 0 : index
    %c1 = arith.constant 1 : index
    %14 = vector.load %arg4[%c0_10, %c1] : memref<5x4xf32, #tpu.memory_space<vmem>>, vector<5x1xf32>
    %15 = vector.broadcast %14 : vector<5x1xf32> to vector<5x128xf32>
    %16 = arith.addf %13, %15 : vector<5x128xf32>
    %c0_11 = arith.constant 0 : index
    %17 = memref.load %arg10[%c0_11] : memref<3xf32, #tpu.memory_space<smem>>
    %cst_12 = arith.constant 0.000000e+00 : f32
    %18 = vector.broadcast %cst_12 : f32 to vector<5x128xf32>
    %19 = arith.cmpf oge, %16, %18 : vector<5x128xf32>
    %20 = vector.broadcast %17 : f32 to vector<5x128xf32>
    %21 = arith.mulf %16, %20 : vector<5x128xf32>
    %22 = arith.select %19, %16, %21 : vector<5x128xi1>, vector<5x128xf32>
    %cst_13 = arith.constant 0.000000e+00 : f32
    %23 = vector.broadcast %cst_13 : f32 to vector<5x16xf32>
    %24 = vector.extract_strided_slice %22 {offsets = [0, 0], sizes = [5, 112], strides = [1, 1]} : vector<5x128xf32> to vector<5x112xf32>
    %25 = tpu.concatenate %23, %24 in 1 : vector<5x16xf32>, vector<5x112xf32> -> vector<5x128xf32>
    %cst_14 = arith.constant 0.000000e+00 : f32
    %26 = vector.broadcast %cst_14 : f32 to vector<5x16xf32>
    %27 = vector.extract_strided_slice %22 {offsets = [0, 16], sizes = [5, 112], strides = [1, 1]} : vector<5x128xf32> to vector<5x112xf32>
    %28 = tpu.concatenate %27, %26 in 1 : vector<5x112xf32>, vector<5x16xf32> -> vector<5x128xf32>
    %29 = tpu.concatenate %25, %22, %28 in 0 : vector<5x128xf32>, vector<5x128xf32>, vector<5x128xf32> -> vector<15x128xf32>
    %c0_15 = arith.constant 0 : index
    %c0_16 = arith.constant 0 : index
    %30 = vector.load %arg5[%c0_15, %c0_16] : memref<5x15xf32, #tpu.memory_space<vmem>>, vector<5x15xf32>
    %cst_17 = arith.constant dense<0.000000e+00> : vector<5x128xf32>
    %31 = tpu.matmul %30, %29, %cst_17 {dimension_numbers = #tpu.dot_dimension_numbers<[1], [0], [0], [1], [0, 0, 1, 1], [], []>} : vector<5x15xf32>, vector<15x128xf32>, vector<5x128xf32> -> vector<5x128xf32>
    %c0_18 = arith.constant 0 : index
    %c2 = arith.constant 2 : index
    %32 = vector.load %arg4[%c0_18, %c2] : memref<5x4xf32, #tpu.memory_space<vmem>>, vector<5x1xf32>
    %33 = vector.broadcast %32 : vector<5x1xf32> to vector<5x128xf32>
    %34 = arith.addf %31, %33 : vector<5x128xf32>
    %35 = arith.addf %34, %11 : vector<5x128xf32>
    %c1_19 = arith.constant 1 : index
    %36 = memref.load %arg10[%c1_19] : memref<3xf32, #tpu.memory_space<smem>>
    %cst_20 = arith.constant 0.000000e+00 : f32
    %37 = vector.broadcast %cst_20 : f32 to vector<5x128xf32>
    %38 = arith.cmpf oge, %35, %37 : vector<5x128xf32>
    %39 = vector.broadcast %36 : f32 to vector<5x128xf32>
    %40 = arith.mulf %35, %39 : vector<5x128xf32>
    %41 = arith.select %38, %35, %40 : vector<5x128xi1>, vector<5x128xf32>
    %c0_21 = arith.constant 0 : index
    %c0_22 = arith.constant 0 : index
    %c0_23 = arith.constant 0 : index
    %42 = vector.load %arg9[%c0_21, %c0_22, %c0_23] : memref<2x5x5xf32, #tpu.memory_space<vmem>>, vector<1x5x5xf32>
    %43 = vector.shape_cast %42 : vector<1x5x5xf32> to vector<5x5xf32>
    %c1_24 = arith.constant 1 : index
    %c0_25 = arith.constant 0 : index
    %c0_26 = arith.constant 0 : index
    %44 = vector.load %arg9[%c1_24, %c0_25, %c0_26] : memref<2x5x5xf32, #tpu.memory_space<vmem>>, vector<1x5x5xf32>
    %45 = vector.shape_cast %44 : vector<1x5x5xf32> to vector<5x5xf32>
    %c0_27 = arith.constant 0 : index
    %c0_28 = arith.constant 0 : index
    %46 = vector.load %arg8[%c0_27, %c0_28] : memref<2x192xf32, #tpu.memory_space<vmem>>, vector<1x192xf32>
    %cst_29 = arith.constant dense<0.000000e+00> : vector<5x128xf32>
    %47 = tpu.matmul %43, %41, %cst_29 {dimension_numbers = #tpu.dot_dimension_numbers<[1], [0], [0], [1], [0, 0, 1, 1], [], []>} : vector<5x5xf32>, vector<5x128xf32>, vector<5x128xf32> -> vector<5x128xf32>
    %cst_30 = arith.constant dense<0.000000e+00> : vector<5x128xf32>
    %48 = tpu.matmul %45, %41, %cst_30 {dimension_numbers = #tpu.dot_dimension_numbers<[1], [0], [0], [1], [0, 0, 1, 1], [], []>} : vector<5x5xf32>, vector<5x128xf32>, vector<5x128xf32> -> vector<5x128xf32>
    %c0_31 = arith.constant 0 : index
    %c0_32 = arith.constant 0 : index
    %c0_33 = arith.constant 0 : index
    %49 = vector.load %arg6[%c0_31, %c0_32, %c0_33] : memref<3x128x192xf32, #tpu.memory_space<vmem>>, vector<1x128x192xf32>
    %50 = vector.shape_cast %49 : vector<1x128x192xf32> to vector<128x192xf32>
    %cst_34 = arith.constant dense<0.000000e+00> : vector<5x192xf32>
    %51 = tpu.matmul %47, %50, %cst_34 {dimension_numbers = #tpu.dot_dimension_numbers<[1], [0], [0], [1], [0, 0, 1, 1], [], []>} : vector<5x128xf32>, vector<128x192xf32>, vector<5x192xf32> -> vector<5x192xf32>
    %c1_35 = arith.constant 1 : index
    %c0_36 = arith.constant 0 : index
    %c0_37 = arith.constant 0 : index
    %52 = vector.load %arg6[%c1_35, %c0_36, %c0_37] : memref<3x128x192xf32, #tpu.memory_space<vmem>>, vector<1x128x192xf32>
    %53 = vector.shape_cast %52 : vector<1x128x192xf32> to vector<128x192xf32>
    %cst_38 = arith.constant dense<0.000000e+00> : vector<5x192xf32>
    %54 = tpu.matmul %41, %53, %cst_38 {dimension_numbers = #tpu.dot_dimension_numbers<[1], [0], [0], [1], [0, 0, 1, 1], [], []>} : vector<5x128xf32>, vector<128x192xf32>, vector<5x192xf32> -> vector<5x192xf32>
    %55 = arith.addf %51, %54 : vector<5x192xf32>
    %c2_39 = arith.constant 2 : index
    %c0_40 = arith.constant 0 : index
    %c0_41 = arith.constant 0 : index
    %56 = vector.load %arg6[%c2_39, %c0_40, %c0_41] : memref<3x128x192xf32, #tpu.memory_space<vmem>>, vector<1x128x192xf32>
    %57 = vector.shape_cast %56 : vector<1x128x192xf32> to vector<128x192xf32>
    %cst_42 = arith.constant dense<0.000000e+00> : vector<5x192xf32>
    %58 = tpu.matmul %48, %57, %cst_42 {dimension_numbers = #tpu.dot_dimension_numbers<[1], [0], [0], [1], [0, 0, 1, 1], [], []>} : vector<5x128xf32>, vector<128x192xf32>, vector<5x192xf32> -> vector<5x192xf32>
    %59 = arith.addf %55, %58 : vector<5x192xf32>
    %60 = vector.broadcast %46 : vector<1x192xf32> to vector<5x192xf32>
    %61 = arith.addf %59, %60 : vector<5x192xf32>
    %c2_43 = arith.constant 2 : index
    %62 = memref.load %arg10[%c2_43] : memref<3xf32, #tpu.memory_space<smem>>
    %cst_44 = arith.constant 0.000000e+00 : f32
    %63 = vector.broadcast %cst_44 : f32 to vector<5x192xf32>
    %64 = arith.cmpf oge, %61, %63 : vector<5x192xf32>
    %65 = vector.broadcast %62 : f32 to vector<5x192xf32>
    %66 = arith.mulf %61, %65 : vector<5x192xf32>
    %67 = arith.select %64, %61, %66 : vector<5x192xi1>, vector<5x192xf32>
    %c1_45 = arith.constant 1 : index
    %c0_46 = arith.constant 0 : index
    %68 = vector.load %arg8[%c1_45, %c0_46] : memref<2x192xf32, #tpu.memory_space<vmem>>, vector<1x192xf32>
    %cst_47 = arith.constant dense<0.000000e+00> : vector<5x192xf32>
    %69 = tpu.matmul %43, %67, %cst_47 {dimension_numbers = #tpu.dot_dimension_numbers<[1], [0], [0], [1], [0, 0, 1, 1], [], []>} : vector<5x5xf32>, vector<5x192xf32>, vector<5x192xf32> -> vector<5x192xf32>
    %cst_48 = arith.constant dense<0.000000e+00> : vector<5x192xf32>
    %70 = tpu.matmul %45, %67, %cst_48 {dimension_numbers = #tpu.dot_dimension_numbers<[1], [0], [0], [1], [0, 0, 1, 1], [], []>} : vector<5x5xf32>, vector<5x192xf32>, vector<5x192xf32> -> vector<5x192xf32>
    %c0_49 = arith.constant 0 : index
    %c0_50 = arith.constant 0 : index
    %c0_51 = arith.constant 0 : index
    %71 = vector.load %arg7[%c0_49, %c0_50, %c0_51] : memref<3x192x192xf32, #tpu.memory_space<vmem>>, vector<1x192x192xf32>
    %72 = vector.shape_cast %71 : vector<1x192x192xf32> to vector<192x192xf32>
    %cst_52 = arith.constant dense<0.000000e+00> : vector<5x192xf32>
    %73 = tpu.matmul %69, %72, %cst_52 {dimension_numbers = #tpu.dot_dimension_numbers<[1], [0], [0], [1], [0, 0, 1, 1], [], []>} : vector<5x192xf32>, vector<192x192xf32>, vector<5x192xf32> -> vector<5x192xf32>
    %c1_53 = arith.constant 1 : index
    %c0_54 = arith.constant 0 : index
    %c0_55 = arith.constant 0 : index
    %74 = vector.load %arg7[%c1_53, %c0_54, %c0_55] : memref<3x192x192xf32, #tpu.memory_space<vmem>>, vector<1x192x192xf32>
    %75 = vector.shape_cast %74 : vector<1x192x192xf32> to vector<192x192xf32>
    %cst_56 = arith.constant dense<0.000000e+00> : vector<5x192xf32>
    %76 = tpu.matmul %67, %75, %cst_56 {dimension_numbers = #tpu.dot_dimension_numbers<[1], [0], [0], [1], [0, 0, 1, 1], [], []>} : vector<5x192xf32>, vector<192x192xf32>, vector<5x192xf32> -> vector<5x192xf32>
    %77 = arith.addf %73, %76 : vector<5x192xf32>
    %c2_57 = arith.constant 2 : index
    %c0_58 = arith.constant 0 : index
    %c0_59 = arith.constant 0 : index
    %78 = vector.load %arg7[%c2_57, %c0_58, %c0_59] : memref<3x192x192xf32, #tpu.memory_space<vmem>>, vector<1x192x192xf32>
    %79 = vector.shape_cast %78 : vector<1x192x192xf32> to vector<192x192xf32>
    %cst_60 = arith.constant dense<0.000000e+00> : vector<5x192xf32>
    %80 = tpu.matmul %70, %79, %cst_60 {dimension_numbers = #tpu.dot_dimension_numbers<[1], [0], [0], [1], [0, 0, 1, 1], [], []>} : vector<5x192xf32>, vector<192x192xf32>, vector<5x192xf32> -> vector<5x192xf32>
    %81 = arith.addf %77, %80 : vector<5x192xf32>
    %82 = vector.broadcast %68 : vector<1x192xf32> to vector<5x192xf32>
    %83 = arith.addf %81, %82 : vector<5x192xf32>
    %c0_61 = arith.constant 0 : index
    %c0_62 = arith.constant 0 : index
    %c0_63 = arith.constant 0 : index
    %84 = vector.load %arg11[%c0_61, %c0_62, %c0_63] : memref<1x5x192xf32, #tpu.memory_space<vmem>>, vector<1x5x192xf32>
    %85 = vector.shape_cast %84 : vector<1x5x192xf32> to vector<5x192xf32>
    %86 = vector.shape_cast %83 : vector<5x192xf32> to vector<1x5x192xf32>
    tpu.vector_store %arg11[%c0_61, %c0_62, %c0_63], %86 {strides = array<i32>} : memref<1x5x192xf32, #tpu.memory_space<vmem>>, vector<1x5x192xf32>,
    return
  }
  func.func @transform_0(%arg0: i32) -> (i32, i32, i32) {
    %c0_i32 = arith.constant 0 : i32
    %c0_i32_0 = arith.constant 0 : i32
    %c0_i32_1 = arith.constant 0 : i32
    return %arg0, %c0_i32, %c0_i32_0 : i32, i32, i32
  }
  func.func @transform_1(%arg0: i32) -> (i32, i32) {
    %c0_i32 = arith.constant 0 : i32
    %c0_i32_0 = arith.constant 0 : i32
    %c0_i32_1 = arith.constant 0 : i32
    return %c0_i32, %c0_i32_0 : i32, i32
  }
  func.func @transform_2(%arg0: i32) -> (i32, i32) {
    %c0_i32 = arith.constant 0 : i32
    %c0_i32_0 = arith.constant 0 : i32
    %c0_i32_1 = arith.constant 0 : i32
    return %c0_i32, %c0_i32_0 : i32, i32
  }
  func.func @transform_3(%arg0: i32) -> (i32, i32) {
    %c0_i32 = arith.constant 0 : i32
    %c0_i32_0 = arith.constant 0 : i32
    %c0_i32_1 = arith.constant 0 : i32
    return %c0_i32, %c0_i32_0 : i32, i32
  }
  func.func @transform_4(%arg0: i32) -> (i32, i32) {
    %c0_i32 = arith.constant 0 : i32
    %c0_i32_0 = arith.constant 0 : i32
    %c0_i32_1 = arith.constant 0 : i32
    return %c0_i32, %c0_i32_0 : i32, i32
  }
  func.func @transform_5(%arg0: i32) -> (i32, i32, i32) {
    %c0_i32 = arith.constant 0 : i32
    %c0_i32_0 = arith.constant 0 : i32
    %c0_i32_1 = arith.constant 0 : i32
    %c0_i32_2 = arith.constant 0 : i32
    return %c0_i32, %c0_i32_0, %c0_i32_1 : i32, i32, i32
  }
  func.func @transform_6(%arg0: i32) -> (i32, i32, i32) {
    %c0_i32 = arith.constant 0 : i32
    %c0_i32_0 = arith.constant 0 : i32
    %c0_i32_1 = arith.constant 0 : i32
    %c0_i32_2 = arith.constant 0 : i32
    return %c0_i32, %c0_i32_0, %c0_i32_1 : i32, i32, i32
  }
  func.func @transform_7(%arg0: i32) -> (i32, i32) {
    %c0_i32 = arith.constant 0 : i32
    %c0_i32_0 = arith.constant 0 : i32
    %c0_i32_1 = arith.constant 0 : i32
    return %c0_i32, %c0_i32_0 : i32, i32
  }
  func.func @transform_8(%arg0: i32) -> (i32, i32, i32) {
    %c0_i32 = arith.constant 0 : i32
    %c0_i32_0 = arith.constant 0 : i32
    %c0_i32_1 = arith.constant 0 : i32
    %c0_i32_2 = arith.constant 0 : i32
    return %c0_i32, %c0_i32_0, %c0_i32_1 : i32, i32, i32
  }
  func.func @transform_9(%arg0: i32) -> i32 {
    %c0_i32 = arith.constant 0 : i32
    %c0_i32_0 = arith.constant 0 : i32
    return %c0_i32 : i32
  }
  func.func @transform_10(%arg0: i32) -> (i32, i32, i32) {
    %c0_i32 = arith.constant 0 : i32
    %c0_i32_0 = arith.constant 0 : i32
    %c0_i32_1 = arith.constant 0 : i32
    return %arg0, %c0_i32, %c0_i32_0 : i32, i32, i32
  }
}

</mosaic_0001>

<llo_original>
// kernel: mul.19
$region0: #{mul.19}
  #allocation0 [shape = 's32[1]{0}', space=sflag, size = 0x4, scoped, tag = 'scoped memory for mul.19']
  %s0 = inlined_call_operand.vmem [shape: f32[5,1], index: 0, kind: input, shape index: {}]
  %s1 = inlined_call_operand.vmem [shape: f32[5,1], index: 1, kind: input, shape index: {}]
  %s2 = inlined_call_operand.vmem [shape: f32[5,1], index: 2, kind: output, shape index: {}]
  %v3 = vld [vmem:[%s0] sm:$0x1f]
  %v4 = vld [vmem:[%s1] sm:$0x1f]
  %5 = xla_tuple %v3, %v4
  %6 = xla_tuple %5
  %v7 = vmul.f32 %v3, %v4
  %8 = xla_tuple %v7
  %9 = vst [vmem:[%s2] sm:$0xff] %v7

// kernel: social_stgcnn_forward.1
$region0: #{social_stgcnn_forward.1}
  #allocation0 [shape = 'u32[]', space=smem, size = 0x4, offset = 0x4, fixed_abs, tag = 'smem constant byte address 0x4 - core index']
  #allocation1 [shape = 'u32[144,128]{1,0:T(1,128)}', space=vmem, size = 0x12000, scoped, tag = 'internal scratch']
  %s0 = inlined_call_operand.vmem [shape: f32[2,2,128], index: 0, kind: input, shape index: {}]
  %s1 = inlined_call_operand.vmem [shape: f32[128,128], index: 1, kind: input, shape index: {}]
  %s2 = inlined_call_operand.vmem [shape: f32[16,2], index: 2, kind: input, shape index: {}]
  %s3 = inlined_call_operand.vmem [shape: f32[5,4], index: 3, kind: input, shape index: {}]
  %s4 = inlined_call_operand.vmem [shape: f32[5,15], index: 4, kind: input, shape index: {}]
  %s5 = inlined_call_operand.vmem [shape: f32[3,128,192], index: 5, kind: input, shape index: {}]
  %s6 = inlined_call_operand.vmem [shape: f32[3,192,192], index: 6, kind: input, shape index: {}]
  %s7 = inlined_call_operand.vmem [shape: f32[2,192], index: 7, kind: input, shape index: {}]
  %s8 = inlined_call_operand.vmem [shape: f32[2,5,5], index: 8, kind: input, shape index: {}]
  %s9 = inlined_call_operand.vmem [shape: f32[3], index: 9, kind: input, shape index: {}]
  %s10 = inlined_call_operand.vmem [shape: f32[2,5,192], index: 10, kind: output, shape index: {}]
  %s11 = sld [smem:[#allocation0]]
  $region77: #{social_stgcnn_forward.1} parent=0
    _
  %s13 = ssub.s32 1, %s11
  %s14 = scalar_select 0, %s13, %s11
  $region1: #{social_stgcnn_forward.1} parent=0
    #allocation2 [shape = 'u8[512]{0}', space=smem, size = 0x200, scoped, tag = 'input window, operand 9, single buffered']
    #allocation3 [shape = 's32[2]{0}', space=sflag, size = 0x8, scoped, tag = 'scoped memory for social_stgcnn_forward.1']
    %15 = vsyncpa [#allocation3], 0
    loop: start=0, step=1, limit=4
    $region2: #{social_stgcnn_forward.1} parent=1 // loop_pre_header
      _
    $region3: #{social_stgcnn_forward.1} parent=1 // loop_header
      %s17 = sphi 0, %s21
      %p18 = scmp.ge.s32.totalorder %s17, 4
      %s27 = sphi 0, %s29
      %s30 = sphi 0, %s27
      %s31 = sphi 0, %s30
      %s47 = sphi 0, %s31
      %s51 = sphi 0, %s51
      %s53 = sphi 0, %s51
      %s54 = sphi 0, %s53
      %s68 = sphi 0, %s54
      %s72 = sphi 0, %s72
      %s74 = sphi 0, %s72
      %s75 = sphi 0, %s74
      %s89 = sphi 0, %s75
      %s93 = sphi 0, %s93
      %s95 = sphi 0, %s93
      %s96 = sphi 0, %s95
      %s110 = sphi 0, %s96
      %s114 = sphi 0, %s114
      %s116 = sphi 0, %s114
      %s117 = sphi 0, %s116
      %s131 = sphi 0, %s117
      %s135 = sphi 0, %s135
      %s137 = sphi 0, %s135
      %s138 = sphi 0, %s137
      %s152 = sphi 0, %s138
      %s156 = sphi 0, %s156
      %s158 = sphi 0, %s156
      %s159 = sphi 0, %s158
      %s173 = sphi 0, %s159
      %s177 = sphi 0, %s177
      %s179 = sphi 0, %s177
      %s180 = sphi 0, %s179
      %s194 = sphi 0, %s180
      %s198 = sphi 0, %s198
      %s200 = sphi 0, %s198
      %s201 = sphi 0, %s200
      %s215 = sphi 0, %s201
      %s219 = sphi 0, %s219
      %s221 = sphi 0, %s219
      %s222 = sphi 0, %s221
      %s236 = sphi 0, %s222
      %s242 = sphi 0, %s244
      %s245 = sphi 0, %s242
      %s246 = sphi 0, %s245
      %s262 = sphi 0, %s246
    $region4: #{social_stgcnn_forward.1} parent=1 // loop_header_branch
      %20 = sbr.rel (%p18) target = $region8
    $region5: #{social_stgcnn_forward.1} parent=1 // loop_body
      %s22 = ssub.s32 %s17, 1
      %s23 = ssub.s32 %s17, 2
      %s24 = sadd.s32 %s17, 1
      %s25 = ssub.s32 %s17, %s24
      %p26 = scmp.eq.s32.totalorder %s25, 0
      %s28 = sadd.s32 %s27, 1
      %s29 = scalar_select %p26, %s27, %s28
      %p32 = pneg %p26
      %p33 = scmp.eq.s32.totalorder %s17, 1
      %p34 = por %p32, %p33
      %p35 = scmp.ne.s32.totalorder %s27, %s30
      %p36 = scmp.eq.s32.totalorder %s17, 0
      %p37 = por %p35, %p36
      %p38 = scmp.ne.s32.totalorder %s27, %s30
      %p39 = scmp.eq.s32.totalorder %s22, 1
      %p40 = por %p38, %p39
      %p41 = scmp.ne.s32.totalorder %s30, %s31
      %p42 = scmp.eq.s32.totalorder %s22, 0
      %p43 = por %p41, %p42
      %p44 = scmp.ne.s32.totalorder %s30, %s31
      %p45 = scmp.eq.s32.totalorder %s23, 1
      %p46 = por %p44, %p45
      %p48 = scmp.ne.s32.totalorder %s31, %s47
      %p49 = scmp.eq.s32.totalorder %s23, 0
      %p50 = por %p48, %p49
      %s52 = sadd.s32 %s51, 1
      %p55 = scmp.eq.s32.totalorder %s17, 1
      %p56 = scmp.ne.s32.totalorder %s51, %s53
      %p57 = scmp.eq.s32.totalorder %s17, 0
      %p58 = por %p56, %p57
      %p59 = scmp.ne.s32.totalorder %s51, %s53
      %p60 = scmp.eq.s32.totalorder %s22, 1
      %p61 = por %p59, %p60
      %p62 = scmp.ne.s32.totalorder %s53, %s54
      %p63 = scmp.eq.s32.totalorder %s22, 0
      %p64 = por %p62, %p63
      %p65 = scmp.ne.s32.totalorder %s53, %s54
      %p66 = scmp.eq.s32.totalorder %s23, 1
      %p67 = por %p65, %p66
      %p69 = scmp.ne.s32.totalorder %s54, %s68
      %p70 = scmp.eq.s32.totalorder %s23, 0
      %p71 = por %p69, %p70
      %s73 = sadd.s32 %s72, 1
      %p76 = scmp.eq.s32.totalorder %s17, 1
      %p77 = scmp.ne.s32.totalorder %s72, %s74
      %p78 = scmp.eq.s32.totalorder %s17, 0
      %p79 = por %p77, %p78
      %p80 = scmp.ne.s32.totalorder %s72, %s74
      %p81 = scmp.eq.s32.totalorder %s22, 1
      %p82 = por %p80, %p81
      %p83 = scmp.ne.s32.totalorder %s74, %s75
      %p84 = scmp.eq.s32.totalorder %s22, 0
      %p85 = por %p83, %p84
      %p86 = scmp.ne.s32.totalorder %s74, %s75
      %p87 = scmp.eq.s32.totalorder %s23, 1
      %p88 = por %p86, %p87
      %p90 = scmp.ne.s32.totalorder %s75, %s89
      %p91 = scmp.eq.s32.totalorder %s23, 0
      %p92 = por %p90, %p91
      %s94 = sadd.s32 %s93, 1
      %p97 = scmp.eq.s32.totalorder %s17, 1
      %p98 = scmp.ne.s32.totalorder %s93, %s95
      %p99 = scmp.eq.s32.totalorder %s17, 0
      %p100 = por %p98, %p99
      %p101 = scmp.ne.s32.totalorder %s93, %s95
      %p102 = scmp.eq.s32.totalorder %s22, 1
      %p103 = por %p101, %p102
      %p104 = scmp.ne.s32.totalorder %s95, %s96
      %p105 = scmp.eq.s32.totalorder %s22, 0
      %p106 = por %p104, %p105
      %p107 = scmp.ne.s32.totalorder %s95, %s96
      %p108 = scmp.eq.s32.totalorder %s23, 1
      %p109 = por %p107, %p108
      %p111 = scmp.ne.s32.totalorder %s96, %s110
      %p112 = scmp.eq.s32.totalorder %s23, 0
      %p113 = por %p111, %p112
      %s115 = sadd.s32 %s114, 1
      %p118 = scmp.eq.s32.totalorder %s17, 1
      %p119 = scmp.ne.s32.totalorder %s114, %s116
      %p120 = scmp.eq.s32.totalorder %s17, 0
      %p121 = por %p119, %p120
      %p122 = scmp.ne.s32.totalorder %s114, %s116
      %p123 = scmp.eq.s32.totalorder %s22, 1
      %p124 = por %p122, %p123
      %p125 = scmp.ne.s32.totalorder %s116, %s117
      %p126 = scmp.eq.s32.totalorder %s22, 0
      %p127 = por %p125, %p126
      %p128 = scmp.ne.s32.totalorder %s116, %s117
      %p129 = scmp.eq.s32.totalorder %s23, 1
      %p130 = por %p128, %p129
      %p132 = scmp.ne.s32.totalorder %s117, %s131
      %p133 = scmp.eq.s32.totalorder %s23, 0
      %p134 = por %p132, %p133
      %s136 = sadd.s32 %s135, 1
      %p139 = scmp.eq.s32.totalorder %s17, 1
      %p140 = scmp.ne.s32.totalorder %s135, %s137
      %p141 = scmp.eq.s32.totalorder %s17, 0
      %p142 = por %p140, %p141
      %p143 = scmp.ne.s32.totalorder %s135, %s137
      %p144 = scmp.eq.s32.totalorder %s22, 1
      %p145 = por %p143, %p144
      %p146 = scmp.ne.s32.totalorder %s137, %s138
      %p147 = scmp.eq.s32.totalorder %s22, 0
      %p148 = por %p146, %p147
      %p149 = scmp.ne.s32.totalorder %s137, %s138
      %p150 = scmp.eq.s32.totalorder %s23, 1
      %p151 = por %p149, %p150
      %p153 = scmp.ne.s32.totalorder %s138, %s152
      %p154 = scmp.eq.s32.totalorder %s23, 0
      %p155 = por %p153, %p154
      %s157 = sadd.s32 %s156, 1
      %p160 = scmp.eq.s32.totalorder %s17, 1
      %p161 = scmp.ne.s32.totalorder %s156, %s158
      %p162 = scmp.eq.s32.totalorder %s17, 0
      %p163 = por %p161, %p162
      %p164 = scmp.ne.s32.totalorder %s156, %s158
      %p165 = scmp.eq.s32.totalorder %s22, 1
      %p166 = por %p164, %p165
      %p167 = scmp.ne.s32.totalorder %s158, %s159
      %p168 = scmp.eq.s32.totalorder %s22, 0
      %p169 = por %p167, %p168
      %p170 = scmp.ne.s32.totalorder %s158, %s159
      %p171 = scmp.eq.s32.totalorder %s23, 1
      %p172 = por %p170, %p171
      %p174 = scmp.ne.s32.totalorder %s159, %s173
      %p175 = scmp.eq.s32.totalorder %s23, 0
      %p176 = por %p174, %p175
      %s178 = sadd.s32 %s177, 1
      %p181 = scmp.eq.s32.totalorder %s17, 1
      %p182 = scmp.ne.s32.totalorder %s177, %s179
      %p183 = scmp.eq.s32.totalorder %s17, 0
      %p184 = por %p182, %p183
      %p185 = scmp.ne.s32.totalorder %s177, %s179
      %p186 = scmp.eq.s32.totalorder %s22, 1
      %p187 = por %p185, %p186
      %p188 = scmp.ne.s32.totalorder %s179, %s180
      %p189 = scmp.eq.s32.totalorder %s22, 0
      %p190 = por %p188, %p189
      %p191 = scmp.ne.s32.totalorder %s179, %s180
      %p192 = scmp.eq.s32.totalorder %s23, 1
      %p193 = por %p191, %p192
      %p195 = scmp.ne.s32.totalorder %s180, %s194
      %p196 = scmp.eq.s32.totalorder %s23, 0
      %p197 = por %p195, %p196
      %s199 = sadd.s32 %s198, 1
      %p202 = scmp.eq.s32.totalorder %s17, 1
      %p203 = scmp.ne.s32.totalorder %s198, %s200
      %p204 = scmp.eq.s32.totalorder %s17, 0
      %p205 = por %p203, %p204
      %p206 = scmp.ne.s32.totalorder %s198, %s200
      %p207 = scmp.eq.s32.totalorder %s22, 1
      %p208 = por %p206, %p207
      %p209 = scmp.ne.s32.totalorder %s200, %s201
      %p210 = scmp.eq.s32.totalorder %s22, 0
      %p211 = por %p209, %p210
      %p212 = scmp.ne.s32.totalorder %s200, %s201
      %p213 = scmp.eq.s32.totalorder %s23, 1
      %p214 = por %p212, %p213
      %p216 = scmp.ne.s32.totalorder %s201, %s215
      %p217 = scmp.eq.s32.totalorder %s23, 0
      %p218 = por %p216, %p217
      %s220 = sadd.s32 %s219, 1
      %p223 = scmp.eq.s32.totalorder %s17, 1
      %p224 = scmp.ne.s32.totalorder %s219, %s221
      %p225 = scmp.eq.s32.totalorder %s17, 0
      %p226 = por %p224, %p225
      %p227 = scmp.ne.s32.totalorder %s219, %s221
      %p228 = scmp.eq.s32.totalorder %s22, 1
      %p229 = por %p227, %p228
      %p230 = scmp.ne.s32.totalorder %s221, %s222
      %p231 = scmp.eq.s32.totalorder %s22, 0
      %p232 = por %p230, %p231
      %p233 = scmp.ne.s32.totalorder %s221, %s222
      %p234 = scmp.eq.s32.totalorder %s23, 1
      %p235 = por %p233, %p234
      %p237 = scmp.ne.s32.totalorder %s222, %s236
      %p238 = scmp.eq.s32.totalorder %s23, 0
      %p239 = por %p237, %p238
      %s240 = ssub.s32 %s17, %s24
      %p241 = scmp.eq.s32.totalorder %s240, 0
      %s243 = sadd.s32 %s242, 1
      %s244 = scalar_select %p241, %s242, %s243
      %p247 = pneg %p241
      %p248 = scmp.eq.s32.totalorder %s17, 1
      %p249 = por %p247, %p248
      %p250 = scmp.ne.s32.totalorder %s242, %s245
      %p251 = scmp.eq.s32.totalorder %s17, 0
      %p252 = por %p250, %p251
      %p253 = scmp.ne.s32.totalorder %s242, %s245
      %p254 = scmp.eq.s32.totalorder %s22, 1
      %p255 = por %p253, %p254
      %p256 = scmp.ne.s32.totalorder %s245, %s246
      %p257 = scmp.eq.s32.totalorder %s22, 0
      %p258 = por %p256, %p257
      %p259 = scmp.ne.s32.totalorder %s245, %s246
      %p260 = scmp.eq.s32.totalorder %s23, 1
      %p261 = por %p259, %p260
      %p263 = scmp.ne.s32.totalorder %s246, %s262
      %p264 = scmp.eq.s32.totalorder %s23, 0
      %p265 = por %p263, %p264
      %p266 = scmp.le.s32.totalorder 1, %s17
      %p267 = scmp.lt.s32.totalorder %s17, 3
      %p268 = pnand %p266, %p267
      %p269 = pneg %p268
      // Predicated region
      $region9: #{social_stgcnn_forward.1} parent=5 // pred_check
        _
      $region10: #{social_stgcnn_forward.1} parent=5 // pred_check_branch
        %271 = sbr.rel (%p268) target = $region12
      $region11: #{social_stgcnn_forward.1} parent=5 // pred_region
        %s272 = ssub.s32 %s17, 1
        // Predicated region
        $region13: #{social_stgcnn_forward.1} parent=11 // pred_check
          %p273 = pneg %p64
        $region14: #{social_stgcnn_forward.1} parent=11 // pred_check_branch
          %275 = sbr.rel (%p273) target = $region16
        $region15: #{social_stgcnn_forward.1} parent=11 // pred_region
          _
        $region16: #{social_stgcnn_forward.1} parent=11 // pred_fallthru
          _
        // Predicated region
        $region17: #{social_stgcnn_forward.1} parent=11 // pred_check
          %p276 = pneg %p85
        $region18: #{social_stgcnn_forward.1} parent=11 // pred_check_branch
          %278 = sbr.rel (%p276) target = $region20
        $region19: #{social_stgcnn_forward.1} parent=11 // pred_region
          _
        $region20: #{social_stgcnn_forward.1} parent=11 // pred_fallthru
          _
        // Predicated region
        $region21: #{social_stgcnn_forward.1} parent=11 // pred_check
          %p279 = pneg %p106
        $region22: #{social_stgcnn_forward.1} parent=11 // pred_check_branch
          %281 = sbr.rel (%p279) target = $region24
        $region23: #{social_stgcnn_forward.1} parent=11 // pred_region
          _
        $region24: #{social_stgcnn_forward.1} parent=11 // pred_fallthru
          _
        // Predicated region
        $region25: #{social_stgcnn_forward.1} parent=11 // pred_check
          %p282 = pneg %p127
        $region26: #{social_stgcnn_forward.1} parent=11 // pred_check_branch
          %284 = sbr.rel (%p282) target = $region28
        $region27: #{social_stgcnn_forward.1} parent=11 // pred_region
          _
        $region28: #{social_stgcnn_forward.1} parent=11 // pred_fallthru
          _
        // Predicated region
        $region29: #{social_stgcnn_forward.1} parent=11 // pred_check
          %p285 = pneg %p148
        $region30: #{social_stgcnn_forward.1} parent=11 // pred_check_branch
          %287 = sbr.rel (%p285) target = $region32
        $region31: #{social_stgcnn_forward.1} parent=11 // pred_region
          _
        $region32: #{social_stgcnn_forward.1} parent=11 // pred_fallthru
          _
        // Predicated region
        $region33: #{social_stgcnn_forward.1} parent=11 // pred_check
          %p288 = pneg %p169
        $region34: #{social_stgcnn_forward.1} parent=11 // pred_check_branch
          %290 = sbr.rel (%p288) target = $region36
        $region35: #{social_stgcnn_forward.1} parent=11 // pred_region
          _
        $region36: #{social_stgcnn_forward.1} parent=11 // pred_fallthru
          _
        // Predicated region
        $region37: #{social_stgcnn_forward.1} parent=11 // pred_check
          %p291 = pneg %p190
        $region38: #{social_stgcnn_forward.1} parent=11 // pred_check_branch
          %293 = sbr.rel (%p291) target = $region40
        $region39: #{social_stgcnn_forward.1} parent=11 // pred_region
          _
        $region40: #{social_stgcnn_forward.1} parent=11 // pred_fallthru
          _
        // Predicated region
        $region41: #{social_stgcnn_forward.1} parent=11 // pred_check
          %p294 = pneg %p211
        $region42: #{social_stgcnn_forward.1} parent=11 // pred_check_branch
          %296 = sbr.rel (%p294) target = $region44
        $region43: #{social_stgcnn_forward.1} parent=11 // pred_region
          _
        $region44: #{social_stgcnn_forward.1} parent=11 // pred_fallthru
          _
        // Predicated region
        $region45: #{social_stgcnn_forward.1} parent=11 // pred_check
          %p297 = pneg %p232
        $region46: #{social_stgcnn_forward.1} parent=11 // pred_check_branch
          %299 = sbr.rel (%p297) target = $region48
        $region47: #{social_stgcnn_forward.1} parent=11 // pred_region
          %s301 = ssub.s32 16, 16
          %302 = vsyncadd [#allocation3], %s301
          %s304 = sshll.u32 %s9, 4
          %s305 = int_to_ptr.vmem [resolvable:$true] %s304
          %307 = dma.vmem_to_smem %s305, 16, [#allocation2], [#allocation3]
        $region48: #{social_stgcnn_forward.1} parent=11 // pred_fallthru
          _
      $region12: #{social_stgcnn_forward.1} parent=5 // pred_fallthru
        _
      %p308 = scmp.lt.s32.totalorder %s17, 2
      // Predicated region
      $region49: #{social_stgcnn_forward.1} parent=5 // pred_check
        %p309 = pneg %p308
      $region50: #{social_stgcnn_forward.1} parent=5 // pred_check_branch
        %311 = sbr.rel (%p309) target = $region52
      $region51: #{social_stgcnn_forward.1} parent=5 // pred_region
        // Predicated region
        $region53: #{social_stgcnn_forward.1} parent=51 // pred_check
          %p312 = pneg %p37
        $region54: #{social_stgcnn_forward.1} parent=51 // pred_check_branch
          %314 = sbr.rel (%p312) target = $region56
        $region55: #{social_stgcnn_forward.1} parent=51 // pred_region
          %p315 = scmp.lt.s32.totalorder %s17, 1
          %s316 = scalar_select %p315, %s17, 1
          %s317 = smul.addr %s316, 2
          %s318 = scalar_lea.vmem %s0, %s317
        $region56: #{social_stgcnn_forward.1} parent=51 // pred_fallthru
          _
      $region52: #{social_stgcnn_forward.1} parent=5 // pred_fallthru
        _
      %p319 = scmp.le.s32.totalorder 1, %s17
      %p320 = scmp.lt.s32.totalorder %s17, 3
      %p321 = pnand %p319, %p320
      %p322 = pneg %p321
      // Predicated region
      $region57: #{social_stgcnn_forward.1} parent=5 // pred_check
        _
      $region58: #{social_stgcnn_forward.1} parent=5 // pred_check_branch
        %324 = sbr.rel (%p321) target = $region60
      $region59: #{social_stgcnn_forward.1} parent=5 // pred_region
        %s325 = ssub.s32 %s17, 1
        // Predicated region
        $region61: #{social_stgcnn_forward.1} parent=59 // pred_check
          %p326 = pneg %p232
        $region62: #{social_stgcnn_forward.1} parent=59 // pred_check_branch
          %328 = sbr.rel (%p326) target = $region64
        $region63: #{social_stgcnn_forward.1} parent=59 // pred_region
          %329 = dma.done [#allocation3], 16
        $region64: #{social_stgcnn_forward.1} parent=59 // pred_fallthru
          _
        %330 = sfence
        %p331 = scmp.lt.s32.totalorder %s22, 1
        %s332 = scalar_select %p331, %s22, 1
        %s333 = smul.addr %s332, 2
        %s334 = scalar_lea.vmem %s0, %s333
        %p335 = pneg %p43
        %p336 = pneg %p40
        %p337 = pneg %p64
        %p338 = pneg %p61
        %p339 = pneg %p85
        %p340 = pneg %p82
        %p341 = pneg %p106
        %p342 = pneg %p103
        %p343 = pneg %p127
        %p344 = pneg %p124
        %p345 = pneg %p148
        %p346 = pneg %p145
        %p347 = pneg %p169
        %p348 = pneg %p166
        %p349 = pneg %p190
        %p350 = pneg %p187
        %p351 = pneg %p211
        %p352 = pneg %p208
        %p353 = pneg %p232
        %p354 = pneg %p229
        %p355 = pneg %p258
        %p356 = pneg %p255
        %p357 = scmp.lt.s32.totalorder %s22, 1
        %s358 = scalar_select %p357, %s22, 1
        %s359 = smul.addr %s358, 2
        %s360 = smul.addr %s359, 8
        %s361 = scalar_lea.vmem %s10, %s360
        %p362 = scmp.lt.s32.totalorder %s22, 1
        %s363 = scalar_select %p362, %s22, 1
        %s364 = smul.addr %s363, 2
        %s365 = scalar_lea.vmem %s0, %s364
        %p366 = scmp.lt.s32.totalorder %s22, 1
        %s367 = scalar_select %p366, %s22, 1
        %s368 = smul.addr %s367, 2
        %s369 = smul.addr %s368, 8
        %s370 = scalar_lea.vmem %s10, %s369
        %v371 = vld [vmem:[%s365] sm:$0x3]
        %v372 = vld [vmem:[%s2] sm:$0xff]
        %v373 = vld [vmem:[%s2 + $0x8] sm:$0xff]
        %vm374 = vcmask 15360
        %v376 = vsel %vm374, %v372, 0
        %v379 = vsel %vm374, %v373, 0
        %vm381 = vcmask 1041408
        %v383 = vsel %vm381, %v371, 0
        %385 = vmatprep.subr.mxu0 0.0
        %386 = vmatpush1.msra.mxu0 %v383
        %387 = vmatprep.subr.mxu0 0.0
        %388 = vmatpush1.msra.mxu0 0.0
        %389 = vmatprep.subr.mxu0 0.0
        %390 = vmatpush1.msra.mxu0 0.0
        %391 = vmatprep.subr.mxu0 0.0
        %392 = vmatpush1.msra.mxu0 0.0
        %393 = vmatprep.subr.mxu0 0.0
        %394 = vmatpush1.msra.mxu0 0.0
        %395 = vmatprep.subr.mxu0 0.0
        %396 = vmatpush1.msra.mxu0 0.0
        %397 = vmatprep.subr.mxu0 0.0
        %398 = vmatpush1.msra.mxu0 0.0
        %399 = vmatprep.subr.mxu0 0.0
        %400 = vmatpush1.msra.mxu0 0.0
        %401 = vmatprep.subr.mxu0 0.0
        %402 = vmatpush1.msra.mxu0 0.0
        %403 = vmatprep.subr.mxu0 0.0
        %404 = vmatpush1.msra.mxu0 0.0
        %405 = vmatprep.subr.mxu0 0.0
        %406 = vmatpush1.msra.mxu0 0.0
        %407 = vmatprep.subr.mxu0 0.0
        %408 = vmatpush1.msra.mxu0 0.0
        %409 = vmatprep.subr.mxu0 0.0
        %410 = vmatpush1.msra.mxu0 0.0
        %411 = vmatprep.subr.mxu0 0.0
        %412 = vmatpush1.msra.mxu0 0.0
        %413 = vmatprep.subr.mxu0 0.0
        %414 = vmatpush1.msra.mxu0 0.0
        %415 = vmatprep.subr.mxu0 0.0
        %416 = vmatpush1.msra.mxu0 0.0
        %417 = vmatprep.subr.mxu0 0.0
        %418 = vmatpush1.msra.mxu0 0.0
        %419 = vmatprep.subr.mxu0 0.0
        %420 = vmatpush1.msra.mxu0 0.0
        %421 = vmatprep.subr.mxu0 0.0
        %422 = vmatpush1.msra.mxu0 0.0
        %423 = vmatprep.subr.mxu0 0.0
        %424 = vmatpush1.msra.mxu0 0.0
        %425 = vmatprep.subr.mxu0 0.0
        %426 = vmatpush1.msra.mxu0 0.0
        %427 = vmatprep.subr.mxu0 0.0
        %428 = vmatpush1.msra.mxu0 0.0
        %429 = vmatprep.subr.mxu0 0.0
        %430 = vmatpush1.msra.mxu0 0.0
        %431 = vmatprep.subr.mxu0 0.0
        %432 = vmatpush1.msra.mxu0 0.0
        %433 = vmatprep.subr.mxu0 0.0
        %434 = vmatpush1.msra.mxu0 0.0
        %435 = vmatprep.subr.mxu0 0.0
        %436 = vmatpush1.msra.mxu0 0.0
        %437 = vmatprep.subr.mxu0 0.0
        %438 = vmatpush1.msra.mxu0 0.0
        %439 = vmatprep.subr.mxu0 0.0
        %440 = vmatpush1.msra.mxu0 0.0
        %441 = vmatprep.subr.mxu0 0.0
        %442 = vmatpush1.msra.mxu0 0.0
        %443 = vmatprep.subr.mxu0 0.0
        %444 = vmatpush1.msra.mxu0 0.0
        %445 = vmatprep.subr.mxu0 0.0
        %446 = vmatpush1.msra.mxu0 0.0
        %447 = vmatprep.subr.mxu0 0.0
        %448 = vmatpush1.msra.mxu0 0.0
        %449 = vmatprep.mubr.f32.mxu0 0.0
        %450 = vmatmul.mubr.f32.gmra.mrb[0].mxu0 %v376
        %v451 = vpop.f32.mrb[0].mxu0
        %v452 = vadd.f32 0.0, %v451
        %v453 = vpop.f32.mrb[0].mxu0
        %454 = vmatprep.mubr.f32.mxu0 0.0
        %455 = vmatmul.mubr.f32.gmra.mrb[0].mxu0 %v379
        %v456 = vpop.f32.mrb[0].mxu0
        %v457 = vadd.f32 0.0, %v456
        %v458 = vpop.f32.mrb[0].mxu0
        %459 = vdwg.mxu0
        %v460 = vld [vmem:[%s3] sm:$0x1f]
        %462 = vset.pattern.permute.xlu0 0
        %463 = vperm.xlu0 %462, %v460
        %v464 = vpop.permute.xlu0 %463
        %v466 = vadd.f32 %v452, %v464
        %467 = vset.pattern.permute.xlu0 3
        %468 = vperm.xlu0 %467, %v460
        %v469 = vpop.permute.xlu0 %468
        %v471 = vadd.f32 %v457, %v469
        %v472 = vld [vmem:[%s1] sm:$0xff]
        %v473 = vld [vmem:[%s1 + $0x8] sm:$0xff]
        %v474 = vld [vmem:[%s1 + $0x10] sm:$0xff]
        %v475 = vld [vmem:[%s1 + $0x18] sm:$0xff]
        %v476 = vld [vmem:[%s1 + $0x20] sm:$0xff]
        %v477 = vld [vmem:[%s1 + $0x28] sm:$0xff]
        %v478 = vld [vmem:[%s1 + $0x30] sm:$0xff]
        %v479 = vld [vmem:[%s1 + $0x38] sm:$0xff]
        %v480 = vld [vmem:[%s1 + $0x40] sm:$0xff]
        %v481 = vld [vmem:[%s1 + $0x48] sm:$0xff]
        %v482 = vld [vmem:[%s1 + $0x50] sm:$0xff]
        %v483 = vld [vmem:[%s1 + $0x58] sm:$0xff]
        %v484 = vld [vmem:[%s1 + $0x60] sm:$0xff]
        %v485 = vld [vmem:[%s1 + $0x68] sm:$0xff]
        %v486 = vld [vmem:[%s1 + $0x70] sm:$0xff]
        %v487 = vld [vmem:[%s1 + $0x78] sm:$0xff]
        %488 = vset.pattern.permute.xlu0 1
        %489 = vperm.xlu0 %488, %v460
        %v490 = vpop.permute.xlu0 %489
        %492 = vmatprep.subr.mxu0 0.0
        %493 = vmatpush1.msra.mxu0 %v472
        %494 = vmatprep.subr.mxu0 0.0
        %495 = vmatpush1.msra.mxu0 %v473
        %496 = vmatprep.subr.mxu0 0.0
        %497 = vmatpush1.msra.mxu0 %v474
        %498 = vmatprep.subr.mxu0 0.0
        %499 = vmatpush1.msra.mxu0 %v475
        %500 = vmatprep.subr.mxu0 0.0
        %501 = vmatpush1.msra.mxu0 %v476
        %502 = vmatprep.subr.mxu0 0.0
        %503 = vmatpush1.msra.mxu0 %v477
        %504 = vmatprep.subr.mxu0 0.0
        %505 = vmatpush1.msra.mxu0 %v478
        %506 = vmatprep.subr.mxu0 0.0
        %507 = vmatpush1.msra.mxu0 %v479
        %508 = vmatprep.subr.mxu0 0.0
        %509 = vmatpush1.msra.mxu0 %v480
        %510 = vmatprep.subr.mxu0 0.0
        %511 = vmatpush1.msra.mxu0 %v481
        %512 = vmatprep.subr.mxu0 0.0
        %513 = vmatpush1.msra.mxu0 %v482
        %514 = vmatprep.subr.mxu0 0.0
        %515 = vmatpush1.msra.mxu0 %v483
        %516 = vmatprep.subr.mxu0 0.0
        %517 = vmatpush1.msra.mxu0 %v484
        %518 = vmatprep.subr.mxu0 0.0
        %519 = vmatpush1.msra.mxu0 %v485
        %520 = vmatprep.subr.mxu0 0.0
        %521 = vmatpush1.msra.mxu0 %v486
        %522 = vmatprep.subr.mxu0 0.0
        %523 = vmatpush1.msra.mxu0 %v487
        %524 = vmatprep.subr.mxu0 0.0
        %525 = vmatpush1.msra.mxu0 0.0
        %526 = vmatprep.subr.mxu0 0.0
        %527 = vmatpush1.msra.mxu0 0.0
        %528 = vmatprep.subr.mxu0 0.0
        %529 = vmatpush1.msra.mxu0 0.0
        %530 = vmatprep.subr.mxu0 0.0
        %531 = vmatpush1.msra.mxu0 0.0
        %532 = vmatprep.subr.mxu0 0.0
        %533 = vmatpush1.msra.mxu0 0.0
        %534 = vmatprep.subr.mxu0 0.0
        %535 = vmatpush1.msra.mxu0 0.0
        %536 = vmatprep.subr.mxu0 0.0
        %537 = vmatpush1.msra.mxu0 0.0
        %538 = vmatprep.subr.mxu0 0.0
        %539 = vmatpush1.msra.mxu0 0.0
        %540 = vmatprep.subr.mxu0 0.0
        %541 = vmatpush1.msra.mxu0 0.0
        %542 = vmatprep.subr.mxu0 0.0
        %543 = vmatpush1.msra.mxu0 0.0
        %544 = vmatprep.subr.mxu0 0.0
        %545 = vmatpush1.msra.mxu0 0.0
        %546 = vmatprep.subr.mxu0 0.0
        %547 = vmatpush1.msra.mxu0 0.0
        %548 = vmatprep.subr.mxu0 0.0
        %549 = vmatpush1.msra.mxu0 0.0
        %550 = vmatprep.subr.mxu0 0.0
        %551 = vmatpush1.msra.mxu0 0.0
        %552 = vmatprep.subr.mxu0 0.0
        %553 = vmatpush1.msra.mxu0 0.0
        %554 = vmatprep.subr.mxu0 0.0
        %555 = vmatpush1.msra.mxu0 0.0
        %556 = vmatprep.mubr.f32.mxu0 0.0
        %557 = vmatmul.mubr.f32.gmra.mrb[0].mxu0 %v466
        %v558 = vpop.f32.mrb[0].mxu0
        %v559 = vadd.f32 %v490, %v558
        %v560 = vpop.f32.mrb[0].mxu0
        %561 = vdwg.mxu0
        %s562 = sld [smem:[#allocation2]]
        %vm563 = vcmp.ge.f32.partialorder %v559, 0.0
        %v564 = vstv %s562
        %v565 = vmul.f32 %v559, %v564
        %v566 = vsel %vm563, %v559, %v565
        %568 = vrot.lane.b32.xlu0 %v566, 16
        %v569 = vpop.permute.xlu0 %568
        %vm571 = vcmask 130048
        %v572 = vsel %vm571, 0.0, %v569
        %573 = vrot.lane.b32.xlu0 %v566, 112
        %v574 = vpop.permute.xlu0 %573
        %vm576 = vcmask 916480
        %v577 = vsel %vm576, %v574, 0.0
        %v578 = vrot.slane %v566, 3
        %v581 = vrot.slane %v577, 6
        %vm583 = vcmask 1044480
        %v584 = vsel %vm583, %v572, %v578
        %v585 = vsel %vm381, %v578, %v581
        %v586 = vld [vmem:[%s4] sm:$0x1f]
        %587 = vset.pattern.permute.xlu0 2
        %588 = vperm.xlu0 %587, %v460
        %v589 = vpop.permute.xlu0 %588
        %vm591 = vcmask 121856
        %v593 = vsel %vm591, %v586, 0
        %vm595 = vcmask 1046528
        %v597 = vsel %vm595, %v585, 0
        %599 = vmatprep.subr.mxu0 0.0
        %600 = vmatpush1.msra.mxu0 %v584
        %601 = vmatprep.subr.mxu0 0.0
        %602 = vmatpush1.msra.mxu0 %v597
        %603 = vmatprep.subr.mxu0 0.0
        %604 = vmatpush1.msra.mxu0 0.0
        %605 = vmatprep.subr.mxu0 0.0
        %606 = vmatpush1.msra.mxu0 0.0
        %607 = vmatprep.subr.mxu0 0.0
        %608 = vmatpush1.msra.mxu0 0.0
        %609 = vmatprep.subr.mxu0 0.0
        %610 = vmatpush1.msra.mxu0 0.0
        %611 = vmatprep.subr.mxu0 0.0
        %612 = vmatpush1.msra.mxu0 0.0
        %613 = vmatprep.subr.mxu0 0.0
        %614 = vmatpush1.msra.mxu0 0.0
        %615 = vmatprep.subr.mxu0 0.0
        %616 = vmatpush1.msra.mxu0 0.0
        %617 = vmatprep.subr.mxu0 0.0
        %618 = vmatpush1.msra.mxu0 0.0
        %619 = vmatprep.subr.mxu0 0.0
        %620 = vmatpush1.msra.mxu0 0.0
        %621 = vmatprep.subr.mxu0 0.0
        %622 = vmatpush1.msra.mxu0 0.0
        %623 = vmatprep.subr.mxu0 0.0
        %624 = vmatpush1.msra.mxu0 0.0
        %625 = vmatprep.subr.mxu0 0.0
        %626 = vmatpush1.msra.mxu0 0.0
        %627 = vmatprep.subr.mxu0 0.0
        %628 = vmatpush1.msra.mxu0 0.0
        %629 = vmatprep.subr.mxu0 0.0
        %630 = vmatpush1.msra.mxu0 0.0
        %631 = vmatprep.subr.mxu0 0.0
        %632 = vmatpush1.msra.mxu0 0.0
        %633 = vmatprep.subr.mxu0 0.0
        %634 = vmatpush1.msra.mxu0 0.0
        %635 = vmatprep.subr.mxu0 0.0
        %636 = vmatpush1.msra.mxu0 0.0
        %637 = vmatprep.subr.mxu0 0.0
        %638 = vmatpush1.msra.mxu0 0.0
        %639 = vmatprep.subr.mxu0 0.0
        %640 = vmatpush1.msra.mxu0 0.0
        %641 = vmatprep.subr.mxu0 0.0
        %642 = vmatpush1.msra.mxu0 0.0
        %643 = vmatprep.subr.mxu0 0.0
        %644 = vmatpush1.msra.mxu0 0.0
        %645 = vmatprep.subr.mxu0 0.0
        %646 = vmatpush1.msra.mxu0 0.0
        %647 = vmatprep.subr.mxu0 0.0
        %648 = vmatpush1.msra.mxu0 0.0
        %649 = vmatprep.subr.mxu0 0.0
        %650 = vmatpush1.msra.mxu0 0.0
        %651 = vmatprep.subr.mxu0 0.0
        %652 = vmatpush1.msra.mxu0 0.0
        %653 = vmatprep.subr.mxu0 0.0
        %654 = vmatpush1.msra.mxu0 0.0
        %655 = vmatprep.subr.mxu0 0.0
        %656 = vmatpush1.msra.mxu0 0.0
        %657 = vmatprep.subr.mxu0 0.0
        %658 = vmatpush1.msra.mxu0 0.0
        %659 = vmatprep.subr.mxu0 0.0
        %660 = vmatpush1.msra.mxu0 0.0
        %661 = vmatprep.subr.mxu0 0.0
        %662 = vmatpush1.msra.mxu0 0.0
        %663 = vmatprep.mubr.f32.mxu0 0.0
        %664 = vmatmul.mubr.f32.gmra.mrb[0].mxu0 %v593
        %v665 = vpop.f32.mrb[0].mxu0
        %v666 = vadd.f32 %v589, %v665
        %v667 = vpop.f32.mrb[0].mxu0
        %668 = vdwg.mxu0
        %v669 = vadd.f32 %v666, %v471
        %s670 = sld [smem:[#allocation2 + $0x1]]
        %vm671 = vcmp.ge.f32.partialorder %v669, 0.0
        %v672 = vstv %s670
        %v673 = vmul.f32 %v669, %v672
        %v674 = vsel %vm671, %v669, %v673
        %v675 = vld [vmem:[%s8] sm:$0x1f]
        %s676 = scalar_lea.vmem %s8, 8
        %v677 = vld [vmem:[%s676] sm:$0x1f]
        %v678 = vld [vmem:[%s7] ss:$2 sm:$0x3]
        %vm679 = vcmask 39936
        %v681 = vsel %vm679, %v675, 0
        %v684 = vsel %vm583, %v674, 0
        %686 = vmatprep.subr.mxu0 0.0
        %687 = vmatpush1.msra.mxu0 %v684
        %688 = vmatprep.subr.mxu0 0.0
        %689 = vmatpush1.msra.mxu0 0.0
        %690 = vmatprep.subr.mxu0 0.0
        %691 = vmatpush1.msra.mxu0 0.0
        %692 = vmatprep.subr.mxu0 0.0
        %693 = vmatpush1.msra.mxu0 0.0
        %694 = vmatprep.subr.mxu0 0.0
        %695 = vmatpush1.msra.mxu0 0.0
        %696 = vmatprep.subr.mxu0 0.0
        %697 = vmatpush1.msra.mxu0 0.0
        %698 = vmatprep.subr.mxu0 0.0
        %699 = vmatpush1.msra.mxu0 0.0
        %700 = vmatprep.subr.mxu0 0.0
        %701 = vmatpush1.msra.mxu0 0.0
        %702 = vmatprep.subr.mxu0 0.0
        %703 = vmatpush1.msra.mxu0 0.0
        %704 = vmatprep.subr.mxu0 0.0
        %705 = vmatpush1.msra.mxu0 0.0
        %706 = vmatprep.subr.mxu0 0.0
        %707 = vmatpush1.msra.mxu0 0.0
        %708 = vmatprep.subr.mxu0 0.0
        %709 = vmatpush1.msra.mxu0 0.0
        %710 = vmatprep.subr.mxu0 0.0
        %711 = vmatpush1.msra.mxu0 0.0
        %712 = vmatprep.subr.mxu0 0.0
        %713 = vmatpush1.msra.mxu0 0.0
        %714 = vmatprep.subr.mxu0 0.0
        %715 = vmatpush1.msra.mxu0 0.0
        %716 = vmatprep.subr.mxu0 0.0
        %717 = vmatpush1.msra.mxu0 0.0
        %718 = vmatprep.subr.mxu0 0.0
        %719 = vmatpush1.msra.mxu0 0.0
        %720 = vmatprep.subr.mxu0 0.0
        %721 = vmatpush1.msra.mxu0 0.0
        %722 = vmatprep.subr.mxu0 0.0
        %723 = vmatpush1.msra.mxu0 0.0
        %724 = vmatprep.subr.mxu0 0.0
        %725 = vmatpush1.msra.mxu0 0.0
        %726 = vmatprep.subr.mxu0 0.0
        %727 = vmatpush1.msra.mxu0 0.0
        %728 = vmatprep.subr.mxu0 0.0
        %729 = vmatpush1.msra.mxu0 0.0
        %730 = vmatprep.subr.mxu0 0.0
        %731 = vmatpush1.msra.mxu0 0.0
        %732 = vmatprep.subr.mxu0 0.0
        %733 = vmatpush1.msra.mxu0 0.0
        %734 = vmatprep.subr.mxu0 0.0
        %735 = vmatpush1.msra.mxu0 0.0
        %736 = vmatprep.subr.mxu0 0.0
        %737 = vmatpush1.msra.mxu0 0.0
        %738 = vmatprep.subr.mxu0 0.0
        %739 = vmatpush1.msra.mxu0 0.0
        %740 = vmatprep.subr.mxu0 0.0
        %741 = vmatpush1.msra.mxu0 0.0
        %742 = vmatprep.subr.mxu0 0.0
        %743 = vmatpush1.msra.mxu0 0.0
        %744 = vmatprep.subr.mxu0 0.0
        %745 = vmatpush1.msra.mxu0 0.0
        %746 = vmatprep.subr.mxu0 0.0
        %747 = vmatpush1.msra.mxu0 0.0
        %748 = vmatprep.subr.mxu0 0.0
        %749 = vmatpush1.msra.mxu0 0.0
        %750 = vmatprep.mubr.f32.mxu0 0.0
        %751 = vmatmul.mubr.f32.gmra.mrb[0].mxu0 %v681
        %v752 = vpop.f32.mrb[0].mxu0
        %v753 = vadd.f32 0.0, %v752
        %v754 = vpop.f32.mrb[0].mxu0
        %755 = vdwg.mxu0
        %v757 = vsel %vm679, %v677, 0
        %759 = vmatprep.subr.mxu0 0.0
        %760 = vmatpush1.msra.mxu0 %v684
        %761 = vmatprep.subr.mxu0 0.0
        %762 = vmatpush1.msra.mxu0 0.0
        %763 = vmatprep.subr.mxu0 0.0
        %764 = vmatpush1.msra.mxu0 0.0
        %765 = vmatprep.subr.mxu0 0.0
        %766 = vmatpush1.msra.mxu0 0.0
        %767 = vmatprep.subr.mxu0 0.0
        %768 = vmatpush1.msra.mxu0 0.0
        %769 = vmatprep.subr.mxu0 0.0
        %770 = vmatpush1.msra.mxu0 0.0
        %771 = vmatprep.subr.mxu0 0.0
        %772 = vmatpush1.msra.mxu0 0.0
        %773 = vmatprep.subr.mxu0 0.0
        %774 = vmatpush1.msra.mxu0 0.0
        %775 = vmatprep.subr.mxu0 0.0
        %776 = vmatpush1.msra.mxu0 0.0
        %777 = vmatprep.subr.mxu0 0.0
        %778 = vmatpush1.msra.mxu0 0.0
        %779 = vmatprep.subr.mxu0 0.0
        %780 = vmatpush1.msra.mxu0 0.0
        %781 = vmatprep.subr.mxu0 0.0
        %782 = vmatpush1.msra.mxu0 0.0
        %783 = vmatprep.subr.mxu0 0.0
        %784 = vmatpush1.msra.mxu0 0.0
        %785 = vmatprep.subr.mxu0 0.0
        %786 = vmatpush1.msra.mxu0 0.0
        %787 = vmatprep.subr.mxu0 0.0
        %788 = vmatpush1.msra.mxu0 0.0
        %789 = vmatprep.subr.mxu0 0.0
        %790 = vmatpush1.msra.mxu0 0.0
        %791 = vmatprep.subr.mxu0 0.0
        %792 = vmatpush1.msra.mxu0 0.0
        %793 = vmatprep.subr.mxu0 0.0
        %794 = vmatpush1.msra.mxu0 0.0
        %795 = vmatprep.subr.mxu0 0.0
        %796 = vmatpush1.msra.mxu0 0.0
        %797 = vmatprep.subr.mxu0 0.0
        %798 = vmatpush1.msra.mxu0 0.0
        %799 = vmatprep.subr.mxu0 0.0
        %800 = vmatpush1.msra.mxu0 0.0
        %801 = vmatprep.subr.mxu0 0.0
        %802 = vmatpush1.msra.mxu0 0.0
        %803 = vmatprep.subr.mxu0 0.0
        %804 = vmatpush1.msra.mxu0 0.0
        %805 = vmatprep.subr.mxu0 0.0
        %806 = vmatpush1.msra.mxu0 0.0
        %807 = vmatprep.subr.mxu0 0.0
        %808 = vmatpush1.msra.mxu0 0.0
        %809 = vmatprep.subr.mxu0 0.0
        %810 = vmatpush1.msra.mxu0 0.0
        %811 = vmatprep.subr.mxu0 0.0
        %812 = vmatpush1.msra.mxu0 0.0
        %813 = vmatprep.subr.mxu0 0.0
        %814 = vmatpush1.msra.mxu0 0.0
        %815 = vmatprep.subr.mxu0 0.0
        %816 = vmatpush1.msra.mxu0 0.0
        %817 = vmatprep.subr.mxu0 0.0
        %818 = vmatpush1.msra.mxu0 0.0
        %819 = vmatprep.subr.mxu0 0.0
        %820 = vmatpush1.msra.mxu0 0.0
        %821 = vmatprep.subr.mxu0 0.0
        %822 = vmatpush1.msra.mxu0 0.0
        %823 = vmatprep.mubr.f32.mxu0 0.0
        %824 = vmatmul.mubr.f32.gmra.mrb[0].mxu0 %v757
        %v825 = vpop.f32.mrb[0].mxu0
        %v826 = vadd.f32 0.0, %v825
        %v827 = vpop.f32.mrb[0].mxu0
        %828 = vdwg.mxu0
        %v829 = vld [vmem:[%s5] sm:$0xff]
        %v830 = vld [vmem:[%s5 + $0x8] sm:$0xff]
        %v831 = vld [vmem:[%s5 + $0x10] sm:$0xff]
        %v832 = vld [vmem:[%s5 + $0x18] sm:$0xff]
        %v833 = vld [vmem:[%s5 + $0x20] sm:$0xff]
        %v834 = vld [vmem:[%s5 + $0x28] sm:$0xff]
        %v835 = vld [vmem:[%s5 + $0x30] sm:$0xff]
        %v836 = vld [vmem:[%s5 + $0x38] sm:$0xff]
        %v837 = vld [vmem:[%s5 + $0x40] sm:$0xff]
        %v838 = vld [vmem:[%s5 + $0x48] sm:$0xff]
        %v839 = vld [vmem:[%s5 + $0x50] sm:$0xff]
        %v840 = vld [vmem:[%s5 + $0x58] sm:$0xff]
        %v841 = vld [vmem:[%s5 + $0x60] sm:$0xff]
        %v842 = vld [vmem:[%s5 + $0x68] sm:$0xff]
        %v843 = vld [vmem:[%s5 + $0x70] sm:$0xff]
        %v844 = vld [vmem:[%s5 + $0x78] sm:$0xff]
        %v845 = vld [vmem:[%s5 + $0x80] sm:$0xff]
        %v846 = vld [vmem:[%s5 + $0x88] sm:$0xff]
        %v847 = vld [vmem:[%s5 + $0x90] sm:$0xff]
        %v848 = vld [vmem:[%s5 + $0x98] sm:$0xff]
        %v849 = vld [vmem:[%s5 + $0xa0] sm:$0xff]
        %v850 = vld [vmem:[%s5 + $0xa8] sm:$0xff]
        %v851 = vld [vmem:[%s5 + $0xb0] sm:$0xff]
        %v852 = vld [vmem:[%s5 + $0xb8] sm:$0xff]
        %v853 = vld [vmem:[%s5 + $0xc0] sm:$0xff]
        %v854 = vld [vmem:[%s5 + $0xc8] sm:$0xff]
        %v855 = vld [vmem:[%s5 + $0xd0] sm:$0xff]
        %v856 = vld [vmem:[%s5 + $0xd8] sm:$0xff]
        %v857 = vld [vmem:[%s5 + $0xe0] sm:$0xff]
        %v858 = vld [vmem:[%s5 + $0xe8] sm:$0xff]
        %v859 = vld [vmem:[%s5 + $0xf0] sm:$0xff]
        %v860 = vld [vmem:[%s5 + $0xf8] sm:$0xff]
        %s861 = scalar_lea.vmem %s5, 256
        %v862 = vld [vmem:[%s861] sm:$0xff]
        %v863 = vld [vmem:[%s861 + $0x8] sm:$0xff]
        %v864 = vld [vmem:[%s861 + $0x10] sm:$0xff]
        %v865 = vld [vmem:[%s861 + $0x18] sm:$0xff]
        %v866 = vld [vmem:[%s861 + $0x20] sm:$0xff]
        %v867 = vld [vmem:[%s861 + $0x28] sm:$0xff]
        %v868 = vld [vmem:[%s861 + $0x30] sm:$0xff]
        %v869 = vld [vmem:[%s861 + $0x38] sm:$0xff]
        %v870 = vld [vmem:[%s861 + $0x40] sm:$0xff]
        %v871 = vld [vmem:[%s861 + $0x48] sm:$0xff]
        %v872 = vld [vmem:[%s861 + $0x50] sm:$0xff]
        %v873 = vld [vmem:[%s861 + $0x58] sm:$0xff]
        %v874 = vld [vmem:[%s861 + $0x60] sm:$0xff]
        %v875 = vld [vmem:[%s861 + $0x68] sm:$0xff]
        %v876 = vld [vmem:[%s861 + $0x70] sm:$0xff]
        %v877 = vld [vmem:[%s861 + $0x78] sm:$0xff]
        %v878 = vld [vmem:[%s861 + $0x80] sm:$0xff]
        %v879 = vld [vmem:[%s861 + $0x88] sm:$0xff]
        %v880 = vld [vmem:[%s861 + $0x90] sm:$0xff]
        %v881 = vld [vmem:[%s861 + $0x98] sm:$0xff]
        %v882 = vld [vmem:[%s861 + $0xa0] sm:$0xff]
        %v883 = vld [vmem:[%s861 + $0xa8] sm:$0xff]
        %v884 = vld [vmem:[%s861 + $0xb0] sm:$0xff]
        %v885 = vld [vmem:[%s861 + $0xb8] sm:$0xff]
        %v886 = vld [vmem:[%s861 + $0xc0] sm:$0xff]
        %v887 = vld [vmem:[%s861 + $0xc8] sm:$0xff]
        %v888 = vld [vmem:[%s861 + $0xd0] sm:$0xff]
        %v889 = vld [vmem:[%s861 + $0xd8] sm:$0xff]
        %v890 = vld [vmem:[%s861 + $0xe0] sm:$0xff]
        %v891 = vld [vmem:[%s861 + $0xe8] sm:$0xff]
        %v892 = vld [vmem:[%s861 + $0xf0] sm:$0xff]
        %v893 = vld [vmem:[%s861 + $0xf8] sm:$0xff]
        %894 = vmatprep.subr.mxu0 %v863
        %895 = vmatpush1.msra.mxu0 %v862
        %896 = vmatprep.subr.mxu0 %v865
        %897 = vmatpush1.msra.mxu0 %v864
        %898 = vmatprep.subr.mxu0 %v867
        %899 = vmatpush1.msra.mxu0 %v866
        %900 = vmatprep.subr.mxu0 %v869
        %901 = vmatpush1.msra.mxu0 %v868
        %902 = vmatprep.subr.mxu0 %v871
        %903 = vmatpush1.msra.mxu0 %v870
        %904 = vmatprep.subr.mxu0 %v873
        %905 = vmatpush1.msra.mxu0 %v872
        %906 = vmatprep.subr.mxu0 %v875
        %907 = vmatpush1.msra.mxu0 %v874
        %908 = vmatprep.subr.mxu0 %v877
        %909 = vmatpush1.msra.mxu0 %v876
        %910 = vmatprep.subr.mxu0 %v879
        %911 = vmatpush1.msra.mxu0 %v878
        %912 = vmatprep.subr.mxu0 %v881
        %913 = vmatpush1.msra.mxu0 %v880
        %914 = vmatprep.subr.mxu0 %v883
        %915 = vmatpush1.msra.mxu0 %v882
        %916 = vmatprep.subr.mxu0 %v885
        %917 = vmatpush1.msra.mxu0 %v884
        %918 = vmatprep.subr.mxu0 %v887
        %919 = vmatpush1.msra.mxu0 %v886
        %920 = vmatprep.subr.mxu0 %v889
        %921 = vmatpush1.msra.mxu0 %v888
        %922 = vmatprep.subr.mxu0 %v891
        %923 = vmatpush1.msra.mxu0 %v890
        %924 = vmatprep.subr.mxu0 %v893
        %925 = vmatpush1.msra.mxu0 %v892
        %926 = vmatprep.subr.mxu0 0.0
        %927 = vmatpush1.msra.mxu0 0.0
        %928 = vmatprep.subr.mxu0 0.0
        %929 = vmatpush1.msra.mxu0 0.0
        %930 = vmatprep.subr.mxu0 0.0
        %931 = vmatpush1.msra.mxu0 0.0
        %932 = vmatprep.subr.mxu0 0.0
        %933 = vmatpush1.msra.mxu0 0.0
        %934 = vmatprep.subr.mxu0 0.0
        %935 = vmatpush1.msra.mxu0 0.0
        %936 = vmatprep.subr.mxu0 0.0
        %937 = vmatpush1.msra.mxu0 0.0
        %938 = vmatprep.subr.mxu0 0.0
        %939 = vmatpush1.msra.mxu0 0.0
        %940 = vmatprep.subr.mxu0 0.0
        %941 = vmatpush1.msra.mxu0 0.0
        %942 = vmatprep.subr.mxu0 0.0
        %943 = vmatpush1.msra.mxu0 0.0
        %944 = vmatprep.subr.mxu0 0.0
        %945 = vmatpush1.msra.mxu0 0.0
        %946 = vmatprep.subr.mxu0 0.0
        %947 = vmatpush1.msra.mxu0 0.0
        %948 = vmatprep.subr.mxu0 0.0
        %949 = vmatpush1.msra.mxu0 0.0
        %950 = vmatprep.subr.mxu0 0.0
        %951 = vmatpush1.msra.mxu0 0.0
        %952 = vmatprep.subr.mxu0 0.0
        %953 = vmatpush1.msra.mxu0 0.0
        %954 = vmatprep.subr.mxu0 0.0
        %955 = vmatpush1.msra.mxu0 0.0
        %956 = vmatprep.subr.mxu0 0.0
        %957 = vmatpush1.msra.mxu0 0.0
        %958 = vmatprep.mubr.f32.mxu0 0.0
        %959 = vmatmul.mubr.f32.gmra.mrb[0].mxu0 %v674
        %v960 = vpop.f32.mrb[0].mxu0
        %v961 = vadd.f32 0.0, %v960
        %v962 = vpop.f32.mrb[0].mxu0
        %v963 = vadd.f32 0.0, %v962
        %964 = vdwg.mxu0
        %965 = vmatprep.subr.mxu0 %v830
        %966 = vmatpush1.msra.mxu0 %v829
        %967 = vmatprep.subr.mxu0 %v832
        %968 = vmatpush1.msra.mxu0 %v831
        %969 = vmatprep.subr.mxu0 %v834
        %970 = vmatpush1.msra.mxu0 %v833
        %971 = vmatprep.subr.mxu0 %v836
        %972 = vmatpush1.msra.mxu0 %v835
        %973 = vmatprep.subr.mxu0 %v838
        %974 = vmatpush1.msra.mxu0 %v837
        %975 = vmatprep.subr.mxu0 %v840
        %976 = vmatpush1.msra.mxu0 %v839
        %977 = vmatprep.subr.mxu0 %v842
        %978 = vmatpush1.msra.mxu0 %v841
        %979 = vmatprep.subr.mxu0 %v844
        %980 = vmatpush1.msra.mxu0 %v843
        %981 = vmatprep.subr.mxu0 %v846
        %982 = vmatpush1.msra.mxu0 %v845
        %983 = vmatprep.subr.mxu0 %v848
        %984 = vmatpush1.msra.mxu0 %v847
        %985 = vmatprep.subr.mxu0 %v850
        %986 = vmatpush1.msra.mxu0 %v849
        %987 = vmatprep.subr.mxu0 %v852
        %988 = vmatpush1.msra.mxu0 %v851
        %989 = vmatprep.subr.mxu0 %v854
        %990 = vmatpush1.msra.mxu0 %v853
        %991 = vmatprep.subr.mxu0 %v856
        %992 = vmatpush1.msra.mxu0 %v855
        %993 = vmatprep.subr.mxu0 %v858
        %994 = vmatpush1.msra.mxu0 %v857
        %995 = vmatprep.subr.mxu0 %v860
        %996 = vmatpush1.msra.mxu0 %v859
        %997 = vmatprep.subr.mxu0 0.0
        %998 = vmatpush1.msra.mxu0 0.0
        %999 = vmatprep.subr.mxu0 0.0
        %1000 = vmatpush1.msra.mxu0 0.0
        %1001 = vmatprep.subr.mxu0 0.0
        %1002 = vmatpush1.msra.mxu0 0.0
        %1003 = vmatprep.subr.mxu0 0.0
        %1004 = vmatpush1.msra.mxu0 0.0
        %1005 = vmatprep.subr.mxu0 0.0
        %1006 = vmatpush1.msra.mxu0 0.0
        %1007 = vmatprep.subr.mxu0 0.0
        %1008 = vmatpush1.msra.mxu0 0.0
        %1009 = vmatprep.subr.mxu0 0.0
        %1010 = vmatpush1.msra.mxu0 0.0
        %1011 = vmatprep.subr.mxu0 0.0
        %1012 = vmatpush1.msra.mxu0 0.0
        %1013 = vmatprep.subr.mxu0 0.0
        %1014 = vmatpush1.msra.mxu0 0.0
        %1015 = vmatprep.subr.mxu0 0.0
        %1016 = vmatpush1.msra.mxu0 0.0
        %1017 = vmatprep.subr.mxu0 0.0
        %1018 = vmatpush1.msra.mxu0 0.0
        %1019 = vmatprep.subr.mxu0 0.0
        %1020 = vmatpush1.msra.mxu0 0.0
        %1021 = vmatprep.subr.mxu0 0.0
        %1022 = vmatpush1.msra.mxu0 0.0
        %1023 = vmatprep.subr.mxu0 0.0
        %1024 = vmatpush1.msra.mxu0 0.0
        %1025 = vmatprep.subr.mxu0 0.0
        %1026 = vmatpush1.msra.mxu0 0.0
        %1027 = vmatprep.subr.mxu0 0.0
        %1028 = vmatpush1.msra.mxu0 0.0
        %1029 = vmatprep.mubr.f32.mxu0 0.0
        %1030 = vmatmul.mubr.f32.gmra.mrb[0].mxu0 %v753
        %v1031 = vpop.f32.mrb[0].mxu0
        %v1032 = vadd.f32 %v961, %v1031
        %v1033 = vpop.f32.mrb[0].mxu0
        %v1034 = vadd.f32 %v963, %v1033
        %1035 = vdwg.mxu0
        %s1036 = scalar_lea.vmem %s5, 512
        %v1037 = vld [vmem:[%s1036] sm:$0xff]
        %v1038 = vld [vmem:[%s1036 + $0x8] sm:$0xff]
        %v1039 = vld [vmem:[%s1036 + $0x10] sm:$0xff]
        %v1040 = vld [vmem:[%s1036 + $0x18] sm:$0xff]
        %v1041 = vld [vmem:[%s1036 + $0x20] sm:$0xff]
        %v1042 = vld [vmem:[%s1036 + $0x28] sm:$0xff]
        %v1043 = vld [vmem:[%s1036 + $0x30] sm:$0xff]
        %v1044 = vld [vmem:[%s1036 + $0x38] sm:$0xff]
        %v1045 = vld [vmem:[%s1036 + $0x40] sm:$0xff]
        %v1046 = vld [vmem:[%s1036 + $0x48] sm:$0xff]
        %v1047 = vld [vmem:[%s1036 + $0x50] sm:$0xff]
        %v1048 = vld [vmem:[%s1036 + $0x58] sm:$0xff]
        %v1049 = vld [vmem:[%s1036 + $0x60] sm:$0xff]
        %v1050 = vld [vmem:[%s1036 + $0x68] sm:$0xff]
        %v1051 = vld [vmem:[%s1036 + $0x70] sm:$0xff]
        %v1052 = vld [vmem:[%s1036 + $0x78] sm:$0xff]
        %v1053 = vld [vmem:[%s1036 + $0x80] sm:$0xff]
        %v1054 = vld [vmem:[%s1036 + $0x88] sm:$0xff]
        %v1055 = vld [vmem:[%s1036 + $0x90] sm:$0xff]
        %v1056 = vld [vmem:[%s1036 + $0x98] sm:$0xff]
        %v1057 = vld [vmem:[%s1036 + $0xa0] sm:$0xff]
        %v1058 = vld [vmem:[%s1036 + $0xa8] sm:$0xff]
        %v1059 = vld [vmem:[%s1036 + $0xb0] sm:$0xff]
        %v1060 = vld [vmem:[%s1036 + $0xb8] sm:$0xff]
        %v1061 = vld [vmem:[%s1036 + $0xc0] sm:$0xff]
        %v1062 = vld [vmem:[%s1036 + $0xc8] sm:$0xff]
        %v1063 = vld [vmem:[%s1036 + $0xd0] sm:$0xff]
        %v1064 = vld [vmem:[%s1036 + $0xd8] sm:$0xff]
        %v1065 = vld [vmem:[%s1036 + $0xe0] sm:$0xff]
        %v1066 = vld [vmem:[%s1036 + $0xe8] sm:$0xff]
        %v1067 = vld [vmem:[%s1036 + $0xf0] sm:$0xff]
        %v1068 = vld [vmem:[%s1036 + $0xf8] sm:$0xff]
        %1069 = vmatprep.subr.mxu0 %v1038
        %1070 = vmatpush1.msra.mxu0 %v1037
        %1071 = vmatprep.subr.mxu0 %v1040
        %1072 = vmatpush1.msra.mxu0 %v1039
        %1073 = vmatprep.subr.mxu0 %v1042
        %1074 = vmatpush1.msra.mxu0 %v1041
        %1075 = vmatprep.subr.mxu0 %v1044
        %1076 = vmatpush1.msra.mxu0 %v1043
        %1077 = vmatprep.subr.mxu0 %v1046
        %1078 = vmatpush1.msra.mxu0 %v1045
        %1079 = vmatprep.subr.mxu0 %v1048
        %1080 = vmatpush1.msra.mxu0 %v1047
        %1081 = vmatprep.subr.mxu0 %v1050
        %1082 = vmatpush1.msra.mxu0 %v1049
        %1083 = vmatprep.subr.mxu0 %v1052
        %1084 = vmatpush1.msra.mxu0 %v1051
        %1085 = vmatprep.subr.mxu0 %v1054
        %1086 = vmatpush1.msra.mxu0 %v1053
        %1087 = vmatprep.subr.mxu0 %v1056
        %1088 = vmatpush1.msra.mxu0 %v1055
        %1089 = vmatprep.subr.mxu0 %v1058
        %1090 = vmatpush1.msra.mxu0 %v1057
        %1091 = vmatprep.subr.mxu0 %v1060
        %1092 = vmatpush1.msra.mxu0 %v1059
        %1093 = vmatprep.subr.mxu0 %v1062
        %1094 = vmatpush1.msra.mxu0 %v1061
        %1095 = vmatprep.subr.mxu0 %v1064
        %1096 = vmatpush1.msra.mxu0 %v1063
        %1097 = vmatprep.subr.mxu0 %v1066
        %1098 = vmatpush1.msra.mxu0 %v1065
        %1099 = vmatprep.subr.mxu0 %v1068
        %1100 = vmatpush1.msra.mxu0 %v1067
        %1101 = vmatprep.subr.mxu0 0.0
        %1102 = vmatpush1.msra.mxu0 0.0
        %1103 = vmatprep.subr.mxu0 0.0
        %1104 = vmatpush1.msra.mxu0 0.0
        %1105 = vmatprep.subr.mxu0 0.0
        %1106 = vmatpush1.msra.mxu0 0.0
        %1107 = vmatprep.subr.mxu0 0.0
        %1108 = vmatpush1.msra.mxu0 0.0
        %1109 = vmatprep.subr.mxu0 0.0
        %1110 = vmatpush1.msra.mxu0 0.0
        %1111 = vmatprep.subr.mxu0 0.0
        %1112 = vmatpush1.msra.mxu0 0.0
        %1113 = vmatprep.subr.mxu0 0.0
        %1114 = vmatpush1.msra.mxu0 0.0
        %1115 = vmatprep.subr.mxu0 0.0
        %1116 = vmatpush1.msra.mxu0 0.0
        %1117 = vmatprep.subr.mxu0 0.0
        %1118 = vmatpush1.msra.mxu0 0.0
        %1119 = vmatprep.subr.mxu0 0.0
        %1120 = vmatpush1.msra.mxu0 0.0
        %1121 = vmatprep.subr.mxu0 0.0
        %1122 = vmatpush1.msra.mxu0 0.0
        %1123 = vmatprep.subr.mxu0 0.0
        %1124 = vmatpush1.msra.mxu0 0.0
        %1125 = vmatprep.subr.mxu0 0.0
        %1126 = vmatpush1.msra.mxu0 0.0
        %1127 = vmatprep.subr.mxu0 0.0
        %1128 = vmatpush1.msra.mxu0 0.0
        %1129 = vmatprep.subr.mxu0 0.0
        %1130 = vmatpush1.msra.mxu0 0.0
        %1131 = vmatprep.subr.mxu0 0.0
        %1132 = vmatpush1.msra.mxu0 0.0
        %1133 = vmatprep.mubr.f32.mxu0 0.0
        %1134 = vmatmul.mubr.f32.gmra.mrb[0].mxu0 %v826
        %v1135 = vpop.f32.mrb[0].mxu0
        %v1136 = vadd.f32 0.0, %v1135
        %v1137 = vpop.f32.mrb[0].mxu0
        %v1138 = vadd.f32 0.0, %v1137
        %1139 = vdwg.mxu0
        %v1140 = vadd.f32 %v1032, %v1136
        %v1141 = vadd.f32 %v1034, %v1138
        %v1143 = vlaneseq
        %v1144 = vshrl.u32 %v1143, 7
        %v1145 = vsub.s32 0, %v1144
        %v1146 = vrot.slane %v678, %v1145
        %v1147 = vlaneseq
        %v1148 = vshrl.u32 %v1147, 7
        %v1149 = vsub.s32 1, %v1148
        %v1150 = vrot.slane %v678, %v1149
        %v1153 = vadd.f32 %v1140, %v1146
        %v1154 = vadd.f32 %v1141, %v1150
        %s1155 = sld [smem:[#allocation2 + $0x2]]
        %vm1156 = vcmp.ge.f32.partialorder %v1153, 0.0
        %vm1157 = vcmp.ge.f32.partialorder %v1154, 0.0
        %v1158 = vstv %s1155
        %v1159 = vmul.f32 %v1153, %v1158
        %v1160 = vmul.f32 %v1154, %v1158
        %v1161 = vsel %vm1156, %v1153, %v1159
        %v1162 = vsel %vm1157, %v1154, %v1160
        %s1163 = scalar_lea.vmem %s7, 1
        %v1164 = vld [vmem:[%s1163] ss:$2 sm:$0x3]
        %v1166 = vsel %vm583, %v1161, 0
        %v1169 = vsel %vm583, %v1162, 0
        %1171 = vmatprep.subr.mxu0 %v1169
        %1172 = vmatpush1.msra.mxu0 %v1166
        %1173 = vmatprep.subr.mxu0 0.0
        %1174 = vmatpush1.msra.mxu0 0.0
        %1175 = vmatprep.subr.mxu0 0.0
        %1176 = vmatpush1.msra.mxu0 0.0
        %1177 = vmatprep.subr.mxu0 0.0
        %1178 = vmatpush1.msra.mxu0 0.0
        %1179 = vmatprep.subr.mxu0 0.0
        %1180 = vmatpush1.msra.mxu0 0.0
        %1181 = vmatprep.subr.mxu0 0.0
        %1182 = vmatpush1.msra.mxu0 0.0
        %1183 = vmatprep.subr.mxu0 0.0
        %1184 = vmatpush1.msra.mxu0 0.0
        %1185 = vmatprep.subr.mxu0 0.0
        %1186 = vmatpush1.msra.mxu0 0.0
        %1187 = vmatprep.subr.mxu0 0.0
        %1188 = vmatpush1.msra.mxu0 0.0
        %1189 = vmatprep.subr.mxu0 0.0
        %1190 = vmatpush1.msra.mxu0 0.0
        %1191 = vmatprep.subr.mxu0 0.0
        %1192 = vmatpush1.msra.mxu0 0.0
        %1193 = vmatprep.subr.mxu0 0.0
        %1194 = vmatpush1.msra.mxu0 0.0
        %1195 = vmatprep.subr.mxu0 0.0
        %1196 = vmatpush1.msra.mxu0 0.0
        %1197 = vmatprep.subr.mxu0 0.0
        %1198 = vmatpush1.msra.mxu0 0.0
        %1199 = vmatprep.subr.mxu0 0.0
        %1200 = vmatpush1.msra.mxu0 0.0
        %1201 = vmatprep.subr.mxu0 0.0
        %1202 = vmatpush1.msra.mxu0 0.0
        %1203 = vmatprep.subr.mxu0 0.0
        %1204 = vmatpush1.msra.mxu0 0.0
        %1205 = vmatprep.subr.mxu0 0.0
        %1206 = vmatpush1.msra.mxu0 0.0
        %1207 = vmatprep.subr.mxu0 0.0
        %1208 = vmatpush1.msra.mxu0 0.0
        %1209 = vmatprep.subr.mxu0 0.0
        %1210 = vmatpush1.msra.mxu0 0.0
        %1211 = vmatprep.subr.mxu0 0.0
        %1212 = vmatpush1.msra.mxu0 0.0
        %1213 = vmatprep.subr.mxu0 0.0
        %1214 = vmatpush1.msra.mxu0 0.0
        %1215 = vmatprep.subr.mxu0 0.0
        %1216 = vmatpush1.msra.mxu0 0.0
        %1217 = vmatprep.subr.mxu0 0.0
        %1218 = vmatpush1.msra.mxu0 0.0
        %1219 = vmatprep.subr.mxu0 0.0
        %1220 = vmatpush1.msra.mxu0 0.0
        %1221 = vmatprep.subr.mxu0 0.0
        %1222 = vmatpush1.msra.mxu0 0.0
        %1223 = vmatprep.subr.mxu0 0.0
        %1224 = vmatpush1.msra.mxu0 0.0
        %1225 = vmatprep.subr.mxu0 0.0
        %1226 = vmatpush1.msra.mxu0 0.0
        %1227 = vmatprep.subr.mxu0 0.0
        %1228 = vmatpush1.msra.mxu0 0.0
        %1229 = vmatprep.subr.mxu0 0.0
        %1230 = vmatpush1.msra.mxu0 0.0
        %1231 = vmatprep.subr.mxu0 0.0
        %1232 = vmatpush1.msra.mxu0 0.0
        %1233 = vmatprep.subr.mxu0 0.0
        %1234 = vmatpush1.msra.mxu0 0.0
        %1235 = vmatprep.mubr.f32.mxu0 0.0
        %1236 = vmatmul.mubr.f32.gmra.mrb[0].mxu0 %v681
        %v1237 = vpop.f32.mrb[0].mxu0
        %v1238 = vadd.f32 0.0, %v1237
        %v1239 = vpop.f32.mrb[0].mxu0
        %v1240 = vadd.f32 0.0, %v1239
        %1241 = vdwg.mxu0
        %1242 = vmatprep.subr.mxu0 %v1169
        %1243 = vmatpush1.msra.mxu0 %v1166
        %1244 = vmatprep.subr.mxu0 0.0
        %1245 = vmatpush1.msra.mxu0 0.0
        %1246 = vmatprep.subr.mxu0 0.0
        %1247 = vmatpush1.msra.mxu0 0.0
        %1248 = vmatprep.subr.mxu0 0.0
        %1249 = vmatpush1.msra.mxu0 0.0
        %1250 = vmatprep.subr.mxu0 0.0
        %1251 = vmatpush1.msra.mxu0 0.0
        %1252 = vmatprep.subr.mxu0 0.0
        %1253 = vmatpush1.msra.mxu0 0.0
        %1254 = vmatprep.subr.mxu0 0.0
        %1255 = vmatpush1.msra.mxu0 0.0
        %1256 = vmatprep.subr.mxu0 0.0
        %1257 = vmatpush1.msra.mxu0 0.0
        %1258 = vmatprep.subr.mxu0 0.0
        %1259 = vmatpush1.msra.mxu0 0.0
        %1260 = vmatprep.subr.mxu0 0.0
        %1261 = vmatpush1.msra.mxu0 0.0
        %1262 = vmatprep.subr.mxu0 0.0
        %1263 = vmatpush1.msra.mxu0 0.0
        %1264 = vmatprep.subr.mxu0 0.0
        %1265 = vmatpush1.msra.mxu0 0.0
        %1266 = vmatprep.subr.mxu0 0.0
        %1267 = vmatpush1.msra.mxu0 0.0
        %1268 = vmatprep.subr.mxu0 0.0
        %1269 = vmatpush1.msra.mxu0 0.0
        %1270 = vmatprep.subr.mxu0 0.0
        %1271 = vmatpush1.msra.mxu0 0.0
        %1272 = vmatprep.subr.mxu0 0.0
        %1273 = vmatpush1.msra.mxu0 0.0
        %1274 = vmatprep.subr.mxu0 0.0
        %1275 = vmatpush1.msra.mxu0 0.0
        %1276 = vmatprep.subr.mxu0 0.0
        %1277 = vmatpush1.msra.mxu0 0.0
        %1278 = vmatprep.subr.mxu0 0.0
        %1279 = vmatpush1.msra.mxu0 0.0
        %1280 = vmatprep.subr.mxu0 0.0
        %1281 = vmatpush1.msra.mxu0 0.0
        %1282 = vmatprep.subr.mxu0 0.0
        %1283 = vmatpush1.msra.mxu0 0.0
        %1284 = vmatprep.subr.mxu0 0.0
        %1285 = vmatpush1.msra.mxu0 0.0
        %1286 = vmatprep.subr.mxu0 0.0
        %1287 = vmatpush1.msra.mxu0 0.0
        %1288 = vmatprep.subr.mxu0 0.0
        %1289 = vmatpush1.msra.mxu0 0.0
        %1290 = vmatprep.subr.mxu0 0.0
        %1291 = vmatpush1.msra.mxu0 0.0
        %1292 = vmatprep.subr.mxu0 0.0
        %1293 = vmatpush1.msra.mxu0 0.0
        %1294 = vmatprep.subr.mxu0 0.0
        %1295 = vmatpush1.msra.mxu0 0.0
        %1296 = vmatprep.subr.mxu0 0.0
        %1297 = vmatpush1.msra.mxu0 0.0
        %1298 = vmatprep.subr.mxu0 0.0
        %1299 = vmatpush1.msra.mxu0 0.0
        %1300 = vmatprep.subr.mxu0 0.0
        %1301 = vmatpush1.msra.mxu0 0.0
        %1302 = vmatprep.subr.mxu0 0.0
        %1303 = vmatpush1.msra.mxu0 0.0
        %1304 = vmatprep.subr.mxu0 0.0
        %1305 = vmatpush1.msra.mxu0 0.0
        %1306 = vmatprep.mubr.f32.mxu0 0.0
        %1307 = vmatmul.mubr.f32.gmra.mrb[0].mxu0 %v757
        %v1308 = vpop.f32.mrb[0].mxu0
        %v1309 = vadd.f32 0.0, %v1308
        %v1310 = vpop.f32.mrb[0].mxu0
        %v1311 = vadd.f32 0.0, %v1310
        %1312 = vdwg.mxu0
        %v1313 = vld [vmem:[%s6] sm:$0xff]
        %v1314 = vld [vmem:[%s6 + $0x8] sm:$0xff]
        %v1315 = vld [vmem:[%s6 + $0x10] sm:$0xff]
        %v1316 = vld [vmem:[%s6 + $0x18] sm:$0xff]
        %v1317 = vld [vmem:[%s6 + $0x20] sm:$0xff]
        %v1318 = vld [vmem:[%s6 + $0x28] sm:$0xff]
        %v1319 = vld [vmem:[%s6 + $0x30] sm:$0xff]
        %v1320 = vld [vmem:[%s6 + $0x38] sm:$0xff]
        %v1321 = vld [vmem:[%s6 + $0x40] sm:$0xff]
        %v1322 = vld [vmem:[%s6 + $0x48] sm:$0xff]
        %v1323 = vld [vmem:[%s6 + $0x50] sm:$0xff]
        %v1324 = vld [vmem:[%s6 + $0x58] sm:$0xff]
        %v1325 = vld [vmem:[%s6 + $0x60] sm:$0xff]
        %v1326 = vld [vmem:[%s6 + $0x68] sm:$0xff]
        %v1327 = vld [vmem:[%s6 + $0x70] sm:$0xff]
        %v1328 = vld [vmem:[%s6 + $0x78] sm:$0xff]
        %v1329 = vld [vmem:[%s6 + $0x80] sm:$0xff]
        %v1330 = vld [vmem:[%s6 + $0x88] sm:$0xff]
        %v1331 = vld [vmem:[%s6 + $0x90] sm:$0xff]
        %v1332 = vld [vmem:[%s6 + $0x98] sm:$0xff]
        %v1333 = vld [vmem:[%s6 + $0xa0] sm:$0xff]
        %v1334 = vld [vmem:[%s6 + $0xa8] sm:$0xff]
        %v1335 = vld [vmem:[%s6 + $0xb0] sm:$0xff]
        %v1336 = vld [vmem:[%s6 + $0xb8] sm:$0xff]
        %v1337 = vld [vmem:[%s6 + $0xc0] sm:$0xff]
        %v1338 = vld [vmem:[%s6 + $0xc8] sm:$0xff]
        %v1339 = vld [vmem:[%s6 + $0xd0] sm:$0xff]
        %v1340 = vld [vmem:[%s6 + $0xd8] sm:$0xff]
        %v1341 = vld [vmem:[%s6 + $0xe0] sm:$0xff]
        %v1342 = vld [vmem:[%s6 + $0xe8] sm:$0xff]
        %v1343 = vld [vmem:[%s6 + $0xf0] sm:$0xff]
        %v1344 = vld [vmem:[%s6 + $0xf8] sm:$0xff]
        %v1345 = vld [vmem:[%s6 + $0x100] sm:$0xff]
        %v1346 = vld [vmem:[%s6 + $0x108] sm:$0xff]
        %v1347 = vld [vmem:[%s6 + $0x110] sm:$0xff]
        %v1348 = vld [vmem:[%s6 + $0x118] sm:$0xff]
        %v1349 = vld [vmem:[%s6 + $0x120] sm:$0xff]
        %v1350 = vld [vmem:[%s6 + $0x128] sm:$0xff]
        %v1351 = vld [vmem:[%s6 + $0x130] sm:$0xff]
        %v1352 = vld [vmem:[%s6 + $0x138] sm:$0xff]
        %v1353 = vld [vmem:[%s6 + $0x140] sm:$0xff]
        %v1354 = vld [vmem:[%s6 + $0x148] sm:$0xff]
        %v1355 = vld [vmem:[%s6 + $0x150] sm:$0xff]
        %v1356 = vld [vmem:[%s6 + $0x158] sm:$0xff]
        %v1357 = vld [vmem:[%s6 + $0x160] sm:$0xff]
        %v1358 = vld [vmem:[%s6 + $0x168] sm:$0xff]
        %v1359 = vld [vmem:[%s6 + $0x170] sm:$0xff]
        %v1360 = vld [vmem:[%s6 + $0x178] sm:$0xff]
        %s1361 = scalar_lea.vmem %s6, 384
        %v1362 = vld [vmem:[%s1361] sm:$0xff]
        %v1363 = vld [vmem:[%s1361 + $0x8] sm:$0xff]
        %v1364 = vld [vmem:[%s1361 + $0x10] sm:$0xff]
        %v1365 = vld [vmem:[%s1361 + $0x18] sm:$0xff]
        %v1366 = vld [vmem:[%s1361 + $0x20] sm:$0xff]
        %v1367 = vld [vmem:[%s1361 + $0x28] sm:$0xff]
        %v1368 = vld [vmem:[%s1361 + $0x30] sm:$0xff]
        %v1369 = vld [vmem:[%s1361 + $0x38] sm:$0xff]
        %v1370 = vld [vmem:[%s1361 + $0x40] sm:$0xff]
        %v1371 = vld [vmem:[%s1361 + $0x48] sm:$0xff]
        %v1372 = vld [vmem:[%s1361 + $0x50] sm:$0xff]
        %v1373 = vld [vmem:[%s1361 + $0x58] sm:$0xff]
        %v1374 = vld [vmem:[%s1361 + $0x60] sm:$0xff]
        %v1375 = vld [vmem:[%s1361 + $0x68] sm:$0xff]
        %v1376 = vld [vmem:[%s1361 + $0x70] sm:$0xff]
        %v1377 = vld [vmem:[%s1361 + $0x78] sm:$0xff]
        %v1378 = vld [vmem:[%s1361 + $0x80] sm:$0xff]
        %v1379 = vld [vmem:[%s1361 + $0x88] sm:$0xff]
        %v1380 = vld [vmem:[%s1361 + $0x90] sm:$0xff]
        %v1381 = vld [vmem:[%s1361 + $0x98] sm:$0xff]
        %v1382 = vld [vmem:[%s1361 + $0xa0] sm:$0xff]
        %v1383 = vld [vmem:[%s1361 + $0xa8] sm:$0xff]
        %v1384 = vld [vmem:[%s1361 + $0xb0] sm:$0xff]
        %v1385 = vld [vmem:[%s1361 + $0xb8] sm:$0xff]
        %v1386 = vld [vmem:[%s1361 + $0xc0] sm:$0xff]
        %v1387 = vld [vmem:[%s1361 + $0xc8] sm:$0xff]
        %v1388 = vld [vmem:[%s1361 + $0xd0] sm:$0xff]
        %v1389 = vld [vmem:[%s1361 + $0xd8] sm:$0xff]
        %v1390 = vld [vmem:[%s1361 + $0xe0] sm:$0xff]
        %v1391 = vld [vmem:[%s1361 + $0xe8] sm:$0xff]
        %v1392 = vld [vmem:[%s1361 + $0xf0] sm:$0xff]
        %v1393 = vld [vmem:[%s1361 + $0xf8] sm:$0xff]
        %v1394 = vld [vmem:[%s1361 + $0x100] sm:$0xff]
        %v1395 = vld [vmem:[%s1361 + $0x108] sm:$0xff]
        %v1396 = vld [vmem:[%s1361 + $0x110] sm:$0xff]
        %v1397 = vld [vmem:[%s1361 + $0x118] sm:$0xff]
        %v1398 = vld [vmem:[%s1361 + $0x120] sm:$0xff]
        %v1399 = vld [vmem:[%s1361 + $0x128] sm:$0xff]
        %v1400 = vld [vmem:[%s1361 + $0x130] sm:$0xff]
        %v1401 = vld [vmem:[%s1361 + $0x138] sm:$0xff]
        %v1402 = vld [vmem:[%s1361 + $0x140] sm:$0xff]
        %v1403 = vld [vmem:[%s1361 + $0x148] sm:$0xff]
        %v1404 = vld [vmem:[%s1361 + $0x150] sm:$0xff]
        %v1405 = vld [vmem:[%s1361 + $0x158] sm:$0xff]
        %v1406 = vld [vmem:[%s1361 + $0x160] sm:$0xff]
        %v1407 = vld [vmem:[%s1361 + $0x168] sm:$0xff]
        %v1408 = vld [vmem:[%s1361 + $0x170] sm:$0xff]
        %v1409 = vld [vmem:[%s1361 + $0x178] sm:$0xff]
        %vm1410 = vcmask 523264
        %v1411 = vsel %vm1410, %v1162, 0
        %1413 = vmatprep.subr.mxu0 %v1363
        %1414 = vmatpush1.msra.mxu0 %v1362
        %1415 = vmatprep.subr.mxu0 %v1365
        %1416 = vmatpush1.msra.mxu0 %v1364
        %1417 = vmatprep.subr.mxu0 %v1367
        %1418 = vmatpush1.msra.mxu0 %v1366
        %1419 = vmatprep.subr.mxu0 %v1369
        %1420 = vmatpush1.msra.mxu0 %v1368
        %1421 = vmatprep.subr.mxu0 %v1371
        %1422 = vmatpush1.msra.mxu0 %v1370
        %1423 = vmatprep.subr.mxu0 %v1373
        %1424 = vmatpush1.msra.mxu0 %v1372
        %1425 = vmatprep.subr.mxu0 %v1375
        %1426 = vmatpush1.msra.mxu0 %v1374
        %1427 = vmatprep.subr.mxu0 %v1377
        %1428 = vmatpush1.msra.mxu0 %v1376
        %1429 = vmatprep.subr.mxu0 %v1379
        %1430 = vmatpush1.msra.mxu0 %v1378
        %1431 = vmatprep.subr.mxu0 %v1381
        %1432 = vmatpush1.msra.mxu0 %v1380
        %1433 = vmatprep.subr.mxu0 %v1383
        %1434 = vmatpush1.msra.mxu0 %v1382
        %1435 = vmatprep.subr.mxu0 %v1385
        %1436 = vmatpush1.msra.mxu0 %v1384
        %1437 = vmatprep.subr.mxu0 %v1387
        %1438 = vmatpush1.msra.mxu0 %v1386
        %1439 = vmatprep.subr.mxu0 %v1389
        %1440 = vmatpush1.msra.mxu0 %v1388
        %1441 = vmatprep.subr.mxu0 %v1391
        %1442 = vmatpush1.msra.mxu0 %v1390
        %1443 = vmatprep.subr.mxu0 %v1393
        %1444 = vmatpush1.msra.mxu0 %v1392
        %1445 = vmatprep.subr.mxu0 %v1395
        %1446 = vmatpush1.msra.mxu0 %v1394
        %1447 = vmatprep.subr.mxu0 %v1397
        %1448 = vmatpush1.msra.mxu0 %v1396
        %1449 = vmatprep.subr.mxu0 %v1399
        %1450 = vmatpush1.msra.mxu0 %v1398
        %1451 = vmatprep.subr.mxu0 %v1401
        %1452 = vmatpush1.msra.mxu0 %v1400
        %1453 = vmatprep.subr.mxu0 %v1403
        %1454 = vmatpush1.msra.mxu0 %v1402
        %1455 = vmatprep.subr.mxu0 %v1405
        %1456 = vmatpush1.msra.mxu0 %v1404
        %1457 = vmatprep.subr.mxu0 %v1407
        %1458 = vmatpush1.msra.mxu0 %v1406
        %1459 = vmatprep.subr.mxu0 %v1409
        %1460 = vmatpush1.msra.mxu0 %v1408
        %1461 = vmatprep.subr.mxu0 0.0
        %1462 = vmatpush1.msra.mxu0 0.0
        %1463 = vmatprep.subr.mxu0 0.0
        %1464 = vmatpush1.msra.mxu0 0.0
        %1465 = vmatprep.subr.mxu0 0.0
        %1466 = vmatpush1.msra.mxu0 0.0
        %1467 = vmatprep.subr.mxu0 0.0
        %1468 = vmatpush1.msra.mxu0 0.0
        %1469 = vmatprep.subr.mxu0 0.0
        %1470 = vmatpush1.msra.mxu0 0.0
        %1471 = vmatprep.subr.mxu0 0.0
        %1472 = vmatpush1.msra.mxu0 0.0
        %1473 = vmatprep.subr.mxu0 0.0
        %1474 = vmatpush1.msra.mxu0 0.0
        %1475 = vmatprep.subr.mxu0 0.0
        %1476 = vmatpush1.msra.mxu0 0.0
        %1477 = vmatprep.mubr.f32.mxu0 %v1411
        %1478 = vmatmul.mubr.f32.gmra.mrb[0].mxu0 %v1161
        %v1479 = vpop.f32.mrb[0].mxu0
        %v1480 = vadd.f32 0.0, %v1479
        %v1481 = vpop.f32.mrb[0].mxu0
        %v1482 = vadd.f32 0.0, %v1481
        %1483 = vdwg.mxu0
        %v1485 = vsel %vm1410, %v1240, 0
        %1487 = vmatprep.subr.mxu0 %v1314
        %1488 = vmatpush1.msra.mxu0 %v1313
        %1489 = vmatprep.subr.mxu0 %v1316
        %1490 = vmatpush1.msra.mxu0 %v1315
        %1491 = vmatprep.subr.mxu0 %v1318
        %1492 = vmatpush1.msra.mxu0 %v1317
        %1493 = vmatprep.subr.mxu0 %v1320
        %1494 = vmatpush1.msra.mxu0 %v1319
        %1495 = vmatprep.subr.mxu0 %v1322
        %1496 = vmatpush1.msra.mxu0 %v1321
        %1497 = vmatprep.subr.mxu0 %v1324
        %1498 = vmatpush1.msra.mxu0 %v1323
        %1499 = vmatprep.subr.mxu0 %v1326
        %1500 = vmatpush1.msra.mxu0 %v1325
        %1501 = vmatprep.subr.mxu0 %v1328
        %1502 = vmatpush1.msra.mxu0 %v1327
        %1503 = vmatprep.subr.mxu0 %v1330
        %1504 = vmatpush1.msra.mxu0 %v1329
        %1505 = vmatprep.subr.mxu0 %v1332
        %1506 = vmatpush1.msra.mxu0 %v1331
        %1507 = vmatprep.subr.mxu0 %v1334
        %1508 = vmatpush1.msra.mxu0 %v1333
        %1509 = vmatprep.subr.mxu0 %v1336
        %1510 = vmatpush1.msra.mxu0 %v1335
        %1511 = vmatprep.subr.mxu0 %v1338
        %1512 = vmatpush1.msra.mxu0 %v1337
        %1513 = vmatprep.subr.mxu0 %v1340
        %1514 = vmatpush1.msra.mxu0 %v1339
        %1515 = vmatprep.subr.mxu0 %v1342
        %1516 = vmatpush1.msra.mxu0 %v1341
        %1517 = vmatprep.subr.mxu0 %v1344
        %1518 = vmatpush1.msra.mxu0 %v1343
        %1519 = vmatprep.subr.mxu0 %v1346
        %1520 = vmatpush1.msra.mxu0 %v1345
        %1521 = vmatprep.subr.mxu0 %v1348
        %1522 = vmatpush1.msra.mxu0 %v1347
        %1523 = vmatprep.subr.mxu0 %v1350
        %1524 = vmatpush1.msra.mxu0 %v1349
        %1525 = vmatprep.subr.mxu0 %v1352
        %1526 = vmatpush1.msra.mxu0 %v1351
        %1527 = vmatprep.subr.mxu0 %v1354
        %1528 = vmatpush1.msra.mxu0 %v1353
        %1529 = vmatprep.subr.mxu0 %v1356
        %1530 = vmatpush1.msra.mxu0 %v1355
        %1531 = vmatprep.subr.mxu0 %v1358
        %1532 = vmatpush1.msra.mxu0 %v1357
        %1533 = vmatprep.subr.mxu0 %v1360
        %1534 = vmatpush1.msra.mxu0 %v1359
        %1535 = vmatprep.subr.mxu0 0.0
        %1536 = vmatpush1.msra.mxu0 0.0
        %1537 = vmatprep.subr.mxu0 0.0
        %1538 = vmatpush1.msra.mxu0 0.0
        %1539 = vmatprep.subr.mxu0 0.0
        %1540 = vmatpush1.msra.mxu0 0.0
        %1541 = vmatprep.subr.mxu0 0.0
        %1542 = vmatpush1.msra.mxu0 0.0
        %1543 = vmatprep.subr.mxu0 0.0
        %1544 = vmatpush1.msra.mxu0 0.0
        %1545 = vmatprep.subr.mxu0 0.0
        %1546 = vmatpush1.msra.mxu0 0.0
        %1547 = vmatprep.subr.mxu0 0.0
        %1548 = vmatpush1.msra.mxu0 0.0
        %1549 = vmatprep.subr.mxu0 0.0
        %1550 = vmatpush1.msra.mxu0 0.0
        %1551 = vmatprep.mubr.f32.mxu0 %v1485
        %1552 = vmatmul.mubr.f32.gmra.mrb[0].mxu0 %v1238
        %v1553 = vpop.f32.mrb[0].mxu0
        %v1554 = vadd.f32 %v1480, %v1553
        %v1555 = vpop.f32.mrb[0].mxu0
        %v1556 = vadd.f32 %v1482, %v1555
        %1557 = vdwg.mxu0
        %s1558 = scalar_lea.vmem %s6, 768
        %v1559 = vld [vmem:[%s1558] sm:$0xff]
        %v1560 = vld [vmem:[%s1558 + $0x8] sm:$0xff]
        %v1561 = vld [vmem:[%s1558 + $0x10] sm:$0xff]
        %v1562 = vld [vmem:[%s1558 + $0x18] sm:$0xff]
        %v1563 = vld [vmem:[%s1558 + $0x20] sm:$0xff]
        %v1564 = vld [vmem:[%s1558 + $0x28] sm:$0xff]
        %v1565 = vld [vmem:[%s1558 + $0x30] sm:$0xff]
        %v1566 = vld [vmem:[%s1558 + $0x38] sm:$0xff]
        %v1567 = vld [vmem:[%s1558 + $0x40] sm:$0xff]
        %v1568 = vld [vmem:[%s1558 + $0x48] sm:$0xff]
        %v1569 = vld [vmem:[%s1558 + $0x50] sm:$0xff]
        %v1570 = vld [vmem:[%s1558 + $0x58] sm:$0xff]
        %v1571 = vld [vmem:[%s1558 + $0x60] sm:$0xff]
        %v1572 = vld [vmem:[%s1558 + $0x68] sm:$0xff]
        %v1573 = vld [vmem:[%s1558 + $0x70] sm:$0xff]
        %v1574 = vld [vmem:[%s1558 + $0x78] sm:$0xff]
        %v1575 = vld [vmem:[%s1558 + $0x80] sm:$0xff]
        %v1576 = vld [vmem:[%s1558 + $0x88] sm:$0xff]
        %v1577 = vld [vmem:[%s1558 + $0x90] sm:$0xff]
        %v1578 = vld [vmem:[%s1558 + $0x98] sm:$0xff]
        %v1579 = vld [vmem:[%s1558 + $0xa0] sm:$0xff]
        %v1580 = vld [vmem:[%s1558 + $0xa8] sm:$0xff]
        %v1581 = vld [vmem:[%s1558 + $0xb0] sm:$0xff]
        %v1582 = vld [vmem:[%s1558 + $0xb8] sm:$0xff]
        %v1583 = vld [vmem:[%s1558 + $0xc0] sm:$0xff]
        %v1584 = vld [vmem:[%s1558 + $0xc8] sm:$0xff]
        %v1585 = vld [vmem:[%s1558 + $0xd0] sm:$0xff]
        %v1586 = vld [vmem:[%s1558 + $0xd8] sm:$0xff]
        %v1587 = vld [vmem:[%s1558 + $0xe0] sm:$0xff]
        %v1588 = vld [vmem:[%s1558 + $0xe8] sm:$0xff]
        %v1589 = vld [vmem:[%s1558 + $0xf0] sm:$0xff]
        %v1590 = vld [vmem:[%s1558 + $0xf8] sm:$0xff]
        %v1591 = vld [vmem:[%s1558 + $0x100] sm:$0xff]
        %v1592 = vld [vmem:[%s1558 + $0x108] sm:$0xff]
        %v1593 = vld [vmem:[%s1558 + $0x110] sm:$0xff]
        %v1594 = vld [vmem:[%s1558 + $0x118] sm:$0xff]
        %v1595 = vld [vmem:[%s1558 + $0x120] sm:$0xff]
        %v1596 = vld [vmem:[%s1558 + $0x128] sm:$0xff]
        %v1597 = vld [vmem:[%s1558 + $0x130] sm:$0xff]
        %v1598 = vld [vmem:[%s1558 + $0x138] sm:$0xff]
        %v1599 = vld [vmem:[%s1558 + $0x140] sm:$0xff]
        %v1600 = vld [vmem:[%s1558 + $0x148] sm:$0xff]
        %v1601 = vld [vmem:[%s1558 + $0x150] sm:$0xff]
        %v1602 = vld [vmem:[%s1558 + $0x158] sm:$0xff]
        %v1603 = vld [vmem:[%s1558 + $0x160] sm:$0xff]
        %v1604 = vld [vmem:[%s1558 + $0x168] sm:$0xff]
        %v1605 = vld [vmem:[%s1558 + $0x170] sm:$0xff]
        %v1606 = vld [vmem:[%s1558 + $0x178] sm:$0xff]
        %v1608 = vsel %vm1410, %v1311, 0
        %1610 = vmatprep.subr.mxu0 %v1560
        %1611 = vmatpush1.msra.mxu0 %v1559
        %1612 = vmatprep.subr.mxu0 %v1562
        %1613 = vmatpush1.msra.mxu0 %v1561
        %1614 = vmatprep.subr.mxu0 %v1564
        %1615 = vmatpush1.msra.mxu0 %v1563
        %1616 = vmatprep.subr.mxu0 %v1566
        %1617 = vmatpush1.msra.mxu0 %v1565
        %1618 = vmatprep.subr.mxu0 %v1568
        %1619 = vmatpush1.msra.mxu0 %v1567
        %1620 = vmatprep.subr.mxu0 %v1570
        %1621 = vmatpush1.msra.mxu0 %v1569
        %1622 = vmatprep.subr.mxu0 %v1572
        %1623 = vmatpush1.msra.mxu0 %v1571
        %1624 = vmatprep.subr.mxu0 %v1574
        %1625 = vmatpush1.msra.mxu0 %v1573
        %1626 = vmatprep.subr.mxu0 %v1576
        %1627 = vmatpush1.msra.mxu0 %v1575
        %1628 = vmatprep.subr.mxu0 %v1578
        %1629 = vmatpush1.msra.mxu0 %v1577
        %1630 = vmatprep.subr.mxu0 %v1580
        %1631 = vmatpush1.msra.mxu0 %v1579
        %1632 = vmatprep.subr.mxu0 %v1582
        %1633 = vmatpush1.msra.mxu0 %v1581
        %1634 = vmatprep.subr.mxu0 %v1584
        %1635 = vmatpush1.msra.mxu0 %v1583
        %1636 = vmatprep.subr.mxu0 %v1586
        %1637 = vmatpush1.msra.mxu0 %v1585
        %1638 = vmatprep.subr.mxu0 %v1588
        %1639 = vmatpush1.msra.mxu0 %v1587
        %1640 = vmatprep.subr.mxu0 %v1590
        %1641 = vmatpush1.msra.mxu0 %v1589
        %1642 = vmatprep.subr.mxu0 %v1592
        %1643 = vmatpush1.msra.mxu0 %v1591
        %1644 = vmatprep.subr.mxu0 %v1594
        %1645 = vmatpush1.msra.mxu0 %v1593
        %1646 = vmatprep.subr.mxu0 %v1596
        %1647 = vmatpush1.msra.mxu0 %v1595
        %1648 = vmatprep.subr.mxu0 %v1598
        %1649 = vmatpush1.msra.mxu0 %v1597
        %1650 = vmatprep.subr.mxu0 %v1600
        %1651 = vmatpush1.msra.mxu0 %v1599
        %1652 = vmatprep.subr.mxu0 %v1602
        %1653 = vmatpush1.msra.mxu0 %v1601
        %1654 = vmatprep.subr.mxu0 %v1604
        %1655 = vmatpush1.msra.mxu0 %v1603
        %1656 = vmatprep.subr.mxu0 %v1606
        %1657 = vmatpush1.msra.mxu0 %v1605
        %1658 = vmatprep.subr.mxu0 0.0
        %1659 = vmatpush1.msra.mxu0 0.0
        %1660 = vmatprep.subr.mxu0 0.0
        %1661 = vmatpush1.msra.mxu0 0.0
        %1662 = vmatprep.subr.mxu0 0.0
        %1663 = vmatpush1.msra.mxu0 0.0
        %1664 = vmatprep.subr.mxu0 0.0
        %1665 = vmatpush1.msra.mxu0 0.0
        %1666 = vmatprep.subr.mxu0 0.0
        %1667 = vmatpush1.msra.mxu0 0.0
        %1668 = vmatprep.subr.mxu0 0.0
        %1669 = vmatpush1.msra.mxu0 0.0
        %1670 = vmatprep.subr.mxu0 0.0
        %1671 = vmatpush1.msra.mxu0 0.0
        %1672 = vmatprep.subr.mxu0 0.0
        %1673 = vmatpush1.msra.mxu0 0.0
        %1674 = vmatprep.mubr.f32.mxu0 %v1608
        %1675 = vmatmul.mubr.f32.gmra.mrb[0].mxu0 %v1309
        %v1676 = vpop.f32.mrb[0].mxu0
        %v1677 = vadd.f32 0.0, %v1676
        %v1678 = vpop.f32.mrb[0].mxu0
        %v1679 = vadd.f32 0.0, %v1678
        %1680 = vdwg.mxu0
        %v1681 = vadd.f32 %v1554, %v1677
        %v1682 = vadd.f32 %v1556, %v1679
        %v1684 = vlaneseq
        %v1685 = vshrl.u32 %v1684, 7
        %v1686 = vsub.s32 0, %v1685
        %v1687 = vrot.slane %v1164, %v1686
        %v1688 = vlaneseq
        %v1689 = vshrl.u32 %v1688, 7
        %v1690 = vsub.s32 1, %v1689
        %v1691 = vrot.slane %v1164, %v1690
        %v1694 = vadd.f32 %v1681, %v1687
        %v1695 = vadd.f32 %v1682, %v1691
        %1696 = vst [vmem:[%s370] sm:$0x1f] %v1694
        %vm1697 = vcmask 520192
        %1698 = vst.msk [vmem:[%s370 + $0x8] sm:$0x1f] %vm1697, %v1695
        %p1699 = scmp.lt.s32.totalorder %s22, 1
        %s1700 = scalar_select %p1699, %s22, 1
        %s1701 = smul.addr %s1700, 2
        %s1702 = smul.addr %s1701, 8
        %s1703 = scalar_lea.vmem %s10, %s1702
        // Predicated region
        $region65: #{social_stgcnn_forward.1} parent=59 // pred_check
          %p1704 = pneg %p255
        $region66: #{social_stgcnn_forward.1} parent=59 // pred_check_branch
          %1706 = sbr.rel (%p1704) target = $region68
        $region67: #{social_stgcnn_forward.1} parent=59 // pred_region
          _
        $region68: #{social_stgcnn_forward.1} parent=59 // pred_fallthru
          _
      $region60: #{social_stgcnn_forward.1} parent=5 // pred_fallthru
        _
      %p1707 = scmp.le.s32.totalorder 2, %s17
      // Predicated region
      $region69: #{social_stgcnn_forward.1} parent=5 // pred_check
        %p1708 = pneg %p1707
      $region70: #{social_stgcnn_forward.1} parent=5 // pred_check_branch
        %1710 = sbr.rel (%p1708) target = $region72
      $region71: #{social_stgcnn_forward.1} parent=5 // pred_region
        %s1711 = ssub.s32 %s17, 2
        // Predicated region
        $region73: #{social_stgcnn_forward.1} parent=71 // pred_check
          %p1712 = pneg %p261
        $region74: #{social_stgcnn_forward.1} parent=71 // pred_check_branch
          %1714 = sbr.rel (%p1712) target = $region76
        $region75: #{social_stgcnn_forward.1} parent=71 // pred_region
          %p1715 = scmp.lt.s32.totalorder %s23, 1
          %s1716 = scalar_select %p1715, %s23, 1
          %s1717 = smul.addr %s1716, 2
          %s1718 = smul.addr %s1717, 8
          %s1719 = scalar_lea.vmem %s10, %s1718
        $region76: #{social_stgcnn_forward.1} parent=71 // pred_fallthru
          _
      $region72: #{social_stgcnn_forward.1} parent=5 // pred_fallthru
        _
    $region6: #{social_stgcnn_forward.1} parent=1 // loop_footer
      %s21 = sadd.s32 1, %s17
    $region7: #{social_stgcnn_forward.1} parent=1 // loop_footer_branch
      %16 = sbr.rel target = $region3
    $region8: #{social_stgcnn_forward.1} parent=1 // loop_exit
      _
    %1720 = vsyncpa [#allocation3], 1
    %s1721 = scalar_lea.sflag [#allocation3], 1
    %1722 = vsyncpa %s1721, 1

</llo_original>
